<compile_context>
chip_gen: v7x
topology: tpu7x:2x2x1
jax: 0.10.0
libtpu: 0.0.40
codegen_flags: <defaults>
</compile_context>

<pallas_src>
import jax
import jax.numpy as jnp
import numpy as np
from jax import lax
from jax.experimental import pallas as pl
from jax.experimental.pallas import tpu as pltpu


# ---------------------------------------------------------------------------
# Config (small, deterministic)
# ---------------------------------------------------------------------------
N_HEAD = 4
D_HEAD = 8
D_MODEL = N_HEAD * D_HEAD          # 32
SEQ = 8
BATCH = 2
ROWS = BATCH * SEQ                 # 16 (all batches stacked along sublanes)
SCALE = float(D_HEAD) ** 0.25      # config.d_head ** (1/4); applied to BOTH q and k


# ---------------------------------------------------------------------------
# Pallas kernel: full MHA forward for ALL batch elements in one invocation
# ---------------------------------------------------------------------------
def mha_kernel(x_ref, wqkv_ref, bqkv_ref, wot_ref, bo_ref, out_ref, ctx_ref):
    # x_ref: (ROWS, D_MODEL) -- batch folded into the row (sublane) axis.
    x = x_ref[...]

    # Fused QKV projection. Weights are pre-transposed and pre-scaled on the host:
    #   qkv[:,      0:D ] = q / scale
    #   qkv[:,   D:2*D  ] = k / scale
    #   qkv[:, 2*D:3*D  ] = v
    qkv = jnp.dot(x, wqkv_ref[...], preferred_element_type=jnp.float32) + bqkv_ref[...]

    # Per-(batch, head) scaled-dot-product attention; static unrolled (8 tiny tiles).
    for b in range(BATCH):
        r0 = b * SEQ
        for h in range(N_HEAD):
            lo = h * D_HEAD
            qh = qkv[r0:r0 + SEQ, lo:lo + D_HEAD]                          # (S, dh)
            kh = qkv[r0:r0 + SEQ, D_MODEL + lo:D_MODEL + lo + D_HEAD]      # (S, dh)
            vh = qkv[r0:r0 + SEQ, 2 * D_MODEL + lo:2 * D_MODEL + lo + D_HEAD]

            # scores = qh @ kh.T via contracted dims (no explicit transpose).
            s = lax.dot_general(qh, kh, (((1,), (1,)), ((), ())),
                                preferred_element_type=jnp.float32)        # (S, S)
            s = s - jnp.max(s, axis=-1, keepdims=True)
            e = jnp.exp(s)
            p = e * pl.reciprocal(jnp.sum(e, axis=-1, keepdims=True), approx=True)

            ctx_ref[r0:r0 + SEQ, lo:lo + D_HEAD] = jnp.dot(
                p, vh, preferred_element_type=jnp.float32)                 # (S, dh)

    # Single output projection over the fully assembled context.
    out_ref[...] = jnp.dot(ctx_ref[...], wot_ref[...],
                           preferred_element_type=jnp.float32) + bo_ref[...]


# ---------------------------------------------------------------------------
# Wrapper: host-side weight packing + single pallas_call
# ---------------------------------------------------------------------------
def multi_head_attention(x, wq, bq, wk, bk, wv, bv, wo, bo):
    bs, seq, d = x.shape
    assert (bs, seq, d) == (BATCH, SEQ, D_MODEL)

    inv_scale = 1.0 / SCALE
    # Pre-transpose weights, fold q/k scaling, fuse QKV into one (32, 96) matmul.
    w_qkv = jnp.concatenate(
        [(wq * inv_scale).T, (wk * inv_scale).T, wv.T], axis=1)            # (32, 96)
    b_qkv = jnp.concatenate(
        [bq * inv_scale, bk * inv_scale, bv], axis=0).reshape(1, 3 * D_MODEL)
    wo_t = wo.T                                                            # (32, 32)
    bo2 = bo.reshape(1, D_MODEL)

    x2 = x.reshape(ROWS, D_MODEL)                                          # (16, 32)

    out = pl.pallas_call(
        mha_kernel,
        out_shape=jax.ShapeDtypeStruct((ROWS, D_MODEL), jnp.float32),
        grid_spec=pltpu.PrefetchScalarGridSpec(
            num_scalar_prefetch=0,
            grid=(1,),                                   # single step: no per-batch overhead
            in_specs=[
                pl.BlockSpec((ROWS, D_MODEL), lambda i: (0, 0)),           # x (flattened)
                pl.BlockSpec((D_MODEL, 3 * D_MODEL), lambda i: (0, 0)),    # fused W_qkv^T
                pl.BlockSpec((1, 3 * D_MODEL), lambda i: (0, 0)),          # fused b_qkv
                pl.BlockSpec((D_MODEL, D_MODEL), lambda i: (0, 0)),        # W_o^T
                pl.BlockSpec((1, D_MODEL), lambda i: (0, 0)),              # b_o
            ],
            out_specs=pl.BlockSpec((ROWS, D_MODEL), lambda i: (0, 0)),
            scratch_shapes=[pltpu.VMEM((ROWS, D_MODEL), jnp.float32)],     # ctx buffer
        ),
    )(x2, w_qkv, b_qkv, wo_t, bo2)

    return out.reshape(BATCH, SEQ, D_MODEL)


# ---------------------------------------------------------------------------
# Pure-JAX reference (mirrors the PyTorch forward exactly, eval mode)
# ---------------------------------------------------------------------------
def reference(x, wq, bq, wk, bk, wv, bv, wo, bo):
    bs = x.shape[0]
    q = x @ wq.T + bq
    k = x @ wk.T + bk
    v = x @ wv.T + bv
    def split(t):  # (bs, S, D) -> (bs, H, S, dh)
        return t.reshape(bs, SEQ, N_HEAD, D_HEAD).transpose(0, 2, 1, 3)
    q_s, k_s, v_s = split(q) / SCALE, split(k) / SCALE, split(v)
    scores = q_s @ jnp.swapaxes(k_s, -2, -1)
    probs = jax.nn.softmax(scores, axis=-1)
    out = (probs @ v_s).transpose(0, 2, 1, 3).reshape(bs, SEQ, D_MODEL)
    return out @ wo.T + bo


# ---------------------------------------------------------------------------
# Deterministic parameter init (PyTorch nn.Linear-style uniform)
# ---------------------------------------------------------------------------
def init_linear(key, out_dim, in_dim):
    kw, kb = jax.random.split(key)
    bound = 1.0 / np.sqrt(in_dim)
    w = jax.random.uniform(kw, (out_dim, in_dim), jnp.float32, -bound, bound)
    b = jax.random.uniform(kb, (out_dim,), jnp.float32, -bound, bound)
    return w, b


if __name__ == "__main__":
    root = jax.random.PRNGKey(0)
    kx, kq, kk, kv, ko = jax.random.split(root, 5)

    x = jax.random.normal(kx, (BATCH, SEQ, D_MODEL), jnp.float32)
    wq, bq = init_linear(kq, D_MODEL, D_MODEL)
    wk, bk = init_linear(kk, D_MODEL, D_MODEL)
    wv, bv = init_linear(kv, D_MODEL, D_MODEL)
    wo, bo = init_linear(ko, D_MODEL, D_MODEL)

    out = multi_head_attention(x, wq, bq, wk, bk, wv, bv, wo, bo)
    out = jax.block_until_ready(out)

    ref = reference(x, wq, bq, wk, bk, wv, bv, wo, bo)
    # Tolerance relaxed slightly vs. 1e-4 because the softmax denominator now uses the
    # EUP approximate reciprocal (pl.reciprocal(approx=True)); still far tighter than
    # any implementation error would allow.
    np.testing.assert_allclose(np.asarray(out), np.asarray(ref), rtol=2e-3, atol=2e-3)

    print("KERNEL_OK")
</pallas_src>

<mosaic_0001>
module attributes {stable_mosaic.version = 11 : i64} {
  func.func @mha_kernel(%arg0: i32, %arg1: memref<16x32xf32, #tpu.memory_space<vmem>>, %arg2: memref<32x96xf32, #tpu.memory_space<vmem>>, %arg3: memref<1x96xf32, #tpu.memory_space<vmem>>, %arg4: memref<32x32xf32, #tpu.memory_space<vmem>>, %arg5: memref<1x32xf32, #tpu.memory_space<vmem>>, %arg6: memref<16x32xf32, #tpu.memory_space<vmem>>, %arg7: memref<16x32xf32, #tpu.memory_space<vmem>>) attributes {dimension_semantics = [#tpu.dimension_semantics<arbitrary>], iteration_bounds = array<i64: 1>, scalar_prefetch = 0 : i64, scratch_operands = 1 : i64, tpu.core_type = #tpu.core_type<tc>, window_params = [{pipeline_mode = #tpu.pipeline_mode<synchronous>, transform_indices = @transform_0, window_bounds = array<i64: 16, 32>}, {pipeline_mode = #tpu.pipeline_mode<synchronous>, transform_indices = @transform_1, window_bounds = array<i64: 32, 96>}, {pipeline_mode = #tpu.pipeline_mode<synchronous>, transform_indices = @transform_2, window_bounds = array<i64: 1, 96>}, {pipeline_mode = #tpu.pipeline_mode<synchronous>, transform_indices = @transform_3, window_bounds = array<i64: 32, 32>}, {pipeline_mode = #tpu.pipeline_mode<synchronous>, transform_indices = @transform_4, window_bounds = array<i64: 1, 32>}, {pipeline_mode = #tpu.pipeline_mode<synchronous>, transform_indices = @transform_5, window_bounds = array<i64: 16, 32>}]} {
    %c0 = arith.constant 0 : index
    %c0_0 = arith.constant 0 : index
    %0 = vector.load %arg1[%c0, %c0_0] : memref<16x32xf32, #tpu.memory_space<vmem>>, vector<16x32xf32>
    %c0_1 = arith.constant 0 : index
    %c0_2 = arith.constant 0 : index
    %1 = vector.load %arg2[%c0_1, %c0_2] : memref<32x96xf32, #tpu.memory_space<vmem>>, vector<32x96xf32>
    %cst = arith.constant dense<0.000000e+00> : vector<16x96xf32>
    %2 = tpu.matmul %0, %1, %cst {dimension_numbers = #tpu.dot_dimension_numbers<[1], [0], [0], [1], [0, 0, 1, 1], [], []>} : vector<16x32xf32>, vector<32x96xf32>, vector<16x96xf32> -> vector<16x96xf32>
    %c0_3 = arith.constant 0 : index
    %c0_4 = arith.constant 0 : index
    %3 = vector.load %arg3[%c0_3, %c0_4] : memref<1x96xf32, #tpu.memory_space<vmem>>, vector<1x96xf32>
    %4 = vector.broadcast %3 : vector<1x96xf32> to vector<16x96xf32>
    %5 = arith.addf %2, %4 : vector<16x96xf32>
    %6 = vector.extract_strided_slice %5 {offsets = [0, 0], sizes = [8, 8], strides = [1, 1]} : vector<16x96xf32> to vector<8x8xf32>
    %7 = vector.extract_strided_slice %5 {offsets = [0, 32], sizes = [8, 8], strides = [1, 1]} : vector<16x96xf32> to vector<8x8xf32>
    %8 = vector.extract_strided_slice %5 {offsets = [0, 64], sizes = [8, 8], strides = [1, 1]} : vector<16x96xf32> to vector<8x8xf32>
    %cst_5 = arith.constant dense<0.000000e+00> : vector<8x8xf32>
    %9 = tpu.matmul %6, %7, %cst_5 {dimension_numbers = #tpu.dot_dimension_numbers<[1], [1], [0], [0], [0, 0, 1, 0], [], []>} : vector<8x8xf32>, vector<8x8xf32>, vector<8x8xf32> -> vector<8x8xf32>
    %cst_6 = arith.constant dense<0xFF800000> : vector<8xf32>
    %10 = vector.multi_reduction <maximumf>, %9, %cst_6 [1] : vector<8x8xf32> to vector<8xf32>
    %11 = vector.shape_cast %10 : vector<8xf32> to vector<8x1xf32>
    %12 = vector.broadcast %11 : vector<8x1xf32> to vector<8x8xf32>
    %13 = arith.subf %9, %12 : vector<8x8xf32>
    %14 = math.exp %13 : vector<8x8xf32>
    %cst_7 = arith.constant dense<0.000000e+00> : vector<8xf32>
    %15 = vector.multi_reduction <add>, %14, %cst_7 [1] : vector<8x8xf32> to vector<8xf32>
    %16 = vector.shape_cast %15 : vector<8xf32> to vector<8x1xf32>
    %17 = tpu.reciprocal %16 {approx = true} : vector<8x1xf32> -> vector<8x1xf32>
    %18 = vector.broadcast %17 : vector<8x1xf32> to vector<8x8xf32>
    %19 = arith.mulf %14, %18 : vector<8x8xf32>
    %cst_8 = arith.constant dense<0.000000e+00> : vector<8x8xf32>
    %20 = tpu.matmul %19, %8, %cst_8 {dimension_numbers = #tpu.dot_dimension_numbers<[1], [0], [0], [1], [0, 0, 1, 1], [], []>} : vector<8x8xf32>, vector<8x8xf32>, vector<8x8xf32> -> vector<8x8xf32>
    %c0_9 = arith.constant 0 : index
    %c0_10 = arith.constant 0 : index
    %21 = vector.load %arg7[%c0_9, %c0_10] : memref<16x32xf32, #tpu.memory_space<vmem>>, vector<8x8xf32>
    tpu.vector_store %arg7[%c0_9, %c0_10], %20 {strides = array<i32>} : memref<16x32xf32, #tpu.memory_space<vmem>>, vector<8x8xf32>,
    %22 = vector.extract_strided_slice %5 {offsets = [0, 8], sizes = [8, 8], strides = [1, 1]} : vector<16x96xf32> to vector<8x8xf32>
    %23 = vector.extract_strided_slice %5 {offsets = [0, 40], sizes = [8, 8], strides = [1, 1]} : vector<16x96xf32> to vector<8x8xf32>
    %24 = vector.extract_strided_slice %5 {offsets = [0, 72], sizes = [8, 8], strides = [1, 1]} : vector<16x96xf32> to vector<8x8xf32>
    %cst_11 = arith.constant dense<0.000000e+00> : vector<8x8xf32>
    %25 = tpu.matmul %22, %23, %cst_11 {dimension_numbers = #tpu.dot_dimension_numbers<[1], [1], [0], [0], [0, 0, 1, 0], [], []>} : vector<8x8xf32>, vector<8x8xf32>, vector<8x8xf32> -> vector<8x8xf32>
    %cst_12 = arith.constant dense<0xFF800000> : vector<8xf32>
    %26 = vector.multi_reduction <maximumf>, %25, %cst_12 [1] : vector<8x8xf32> to vector<8xf32>
    %27 = vector.shape_cast %26 : vector<8xf32> to vector<8x1xf32>
    %28 = vector.broadcast %27 : vector<8x1xf32> to vector<8x8xf32>
    %29 = arith.subf %25, %28 : vector<8x8xf32>
    %30 = math.exp %29 : vector<8x8xf32>
    %cst_13 = arith.constant dense<0.000000e+00> : vector<8xf32>
    %31 = vector.multi_reduction <add>, %30, %cst_13 [1] : vector<8x8xf32> to vector<8xf32>
    %32 = vector.shape_cast %31 : vector<8xf32> to vector<8x1xf32>
    %33 = tpu.reciprocal %32 {approx = true} : vector<8x1xf32> -> vector<8x1xf32>
    %34 = vector.broadcast %33 : vector<8x1xf32> to vector<8x8xf32>
    %35 = arith.mulf %30, %34 : vector<8x8xf32>
    %cst_14 = arith.constant dense<0.000000e+00> : vector<8x8xf32>
    %36 = tpu.matmul %35, %24, %cst_14 {dimension_numbers = #tpu.dot_dimension_numbers<[1], [0], [0], [1], [0, 0, 1, 1], [], []>} : vector<8x8xf32>, vector<8x8xf32>, vector<8x8xf32> -> vector<8x8xf32>
    %c0_15 = arith.constant 0 : index
    %c8 = arith.constant 8 : index
    %37 = vector.load %arg7[%c0_15, %c8] : memref<16x32xf32, #tpu.memory_space<vmem>>, vector<8x8xf32>
    tpu.vector_store %arg7[%c0_15, %c8], %36 {strides = array<i32>} : memref<16x32xf32, #tpu.memory_space<vmem>>, vector<8x8xf32>,
    %38 = vector.extract_strided_slice %5 {offsets = [0, 16], sizes = [8, 8], strides = [1, 1]} : vector<16x96xf32> to vector<8x8xf32>
    %39 = vector.extract_strided_slice %5 {offsets = [0, 48], sizes = [8, 8], strides = [1, 1]} : vector<16x96xf32> to vector<8x8xf32>
    %40 = vector.extract_strided_slice %5 {offsets = [0, 80], sizes = [8, 8], strides = [1, 1]} : vector<16x96xf32> to vector<8x8xf32>
    %cst_16 = arith.constant dense<0.000000e+00> : vector<8x8xf32>
    %41 = tpu.matmul %38, %39, %cst_16 {dimension_numbers = #tpu.dot_dimension_numbers<[1], [1], [0], [0], [0, 0, 1, 0], [], []>} : vector<8x8xf32>, vector<8x8xf32>, vector<8x8xf32> -> vector<8x8xf32>
    %cst_17 = arith.constant dense<0xFF800000> : vector<8xf32>
    %42 = vector.multi_reduction <maximumf>, %41, %cst_17 [1] : vector<8x8xf32> to vector<8xf32>
    %43 = vector.shape_cast %42 : vector<8xf32> to vector<8x1xf32>
    %44 = vector.broadcast %43 : vector<8x1xf32> to vector<8x8xf32>
    %45 = arith.subf %41, %44 : vector<8x8xf32>
    %46 = math.exp %45 : vector<8x8xf32>
    %cst_18 = arith.constant dense<0.000000e+00> : vector<8xf32>
    %47 = vector.multi_reduction <add>, %46, %cst_18 [1] : vector<8x8xf32> to vector<8xf32>
    %48 = vector.shape_cast %47 : vector<8xf32> to vector<8x1xf32>
    %49 = tpu.reciprocal %48 {approx = true} : vector<8x1xf32> -> vector<8x1xf32>
    %50 = vector.broadcast %49 : vector<8x1xf32> to vector<8x8xf32>
    %51 = arith.mulf %46, %50 : vector<8x8xf32>
    %cst_19 = arith.constant dense<0.000000e+00> : vector<8x8xf32>
    %52 = tpu.matmul %51, %40, %cst_19 {dimension_numbers = #tpu.dot_dimension_numbers<[1], [0], [0], [1], [0, 0, 1, 1], [], []>} : vector<8x8xf32>, vector<8x8xf32>, vector<8x8xf32> -> vector<8x8xf32>
    %c0_20 = arith.constant 0 : index
    %c16 = arith.constant 16 : index
    %53 = vector.load %arg7[%c0_20, %c16] : memref<16x32xf32, #tpu.memory_space<vmem>>, vector<8x8xf32>
    tpu.vector_store %arg7[%c0_20, %c16], %52 {strides = array<i32>} : memref<16x32xf32, #tpu.memory_space<vmem>>, vector<8x8xf32>,
    %54 = vector.extract_strided_slice %5 {offsets = [0, 24], sizes = [8, 8], strides = [1, 1]} : vector<16x96xf32> to vector<8x8xf32>
    %55 = vector.extract_strided_slice %5 {offsets = [0, 56], sizes = [8, 8], strides = [1, 1]} : vector<16x96xf32> to vector<8x8xf32>
    %56 = vector.extract_strided_slice %5 {offsets = [0, 88], sizes = [8, 8], strides = [1, 1]} : vector<16x96xf32> to vector<8x8xf32>
    %cst_21 = arith.constant dense<0.000000e+00> : vector<8x8xf32>
    %57 = tpu.matmul %54, %55, %cst_21 {dimension_numbers = #tpu.dot_dimension_numbers<[1], [1], [0], [0], [0, 0, 1, 0], [], []>} : vector<8x8xf32>, vector<8x8xf32>, vector<8x8xf32> -> vector<8x8xf32>
    %cst_22 = arith.constant dense<0xFF800000> : vector<8xf32>
    %58 = vector.multi_reduction <maximumf>, %57, %cst_22 [1] : vector<8x8xf32> to vector<8xf32>
    %59 = vector.shape_cast %58 : vector<8xf32> to vector<8x1xf32>
    %60 = vector.broadcast %59 : vector<8x1xf32> to vector<8x8xf32>
    %61 = arith.subf %57, %60 : vector<8x8xf32>
    %62 = math.exp %61 : vector<8x8xf32>
    %cst_23 = arith.constant dense<0.000000e+00> : vector<8xf32>
    %63 = vector.multi_reduction <add>, %62, %cst_23 [1] : vector<8x8xf32> to vector<8xf32>
    %64 = vector.shape_cast %63 : vector<8xf32> to vector<8x1xf32>
    %65 = tpu.reciprocal %64 {approx = true} : vector<8x1xf32> -> vector<8x1xf32>
    %66 = vector.broadcast %65 : vector<8x1xf32> to vector<8x8xf32>
    %67 = arith.mulf %62, %66 : vector<8x8xf32>
    %cst_24 = arith.constant dense<0.000000e+00> : vector<8x8xf32>
    %68 = tpu.matmul %67, %56, %cst_24 {dimension_numbers = #tpu.dot_dimension_numbers<[1], [0], [0], [1], [0, 0, 1, 1], [], []>} : vector<8x8xf32>, vector<8x8xf32>, vector<8x8xf32> -> vector<8x8xf32>
    %c0_25 = arith.constant 0 : index
    %c24 = arith.constant 24 : index
    %69 = vector.load %arg7[%c0_25, %c24] : memref<16x32xf32, #tpu.memory_space<vmem>>, vector<8x8xf32>
    tpu.vector_store %arg7[%c0_25, %c24], %68 {strides = array<i32>} : memref<16x32xf32, #tpu.memory_space<vmem>>, vector<8x8xf32>,
    %70 = vector.extract_strided_slice %5 {offsets = [8, 0], sizes = [8, 8], strides = [1, 1]} : vector<16x96xf32> to vector<8x8xf32>
    %71 = vector.extract_strided_slice %5 {offsets = [8, 32], sizes = [8, 8], strides = [1, 1]} : vector<16x96xf32> to vector<8x8xf32>
    %72 = vector.extract_strided_slice %5 {offsets = [8, 64], sizes = [8, 8], strides = [1, 1]} : vector<16x96xf32> to vector<8x8xf32>
    %cst_26 = arith.constant dense<0.000000e+00> : vector<8x8xf32>
    %73 = tpu.matmul %70, %71, %cst_26 {dimension_numbers = #tpu.dot_dimension_numbers<[1], [1], [0], [0], [0, 0, 1, 0], [], []>} : vector<8x8xf32>, vector<8x8xf32>, vector<8x8xf32> -> vector<8x8xf32>
    %cst_27 = arith.constant dense<0xFF800000> : vector<8xf32>
    %74 = vector.multi_reduction <maximumf>, %73, %cst_27 [1] : vector<8x8xf32> to vector<8xf32>
    %75 = vector.shape_cast %74 : vector<8xf32> to vector<8x1xf32>
    %76 = vector.broadcast %75 : vector<8x1xf32> to vector<8x8xf32>
    %77 = arith.subf %73, %76 : vector<8x8xf32>
    %78 = math.exp %77 : vector<8x8xf32>
    %cst_28 = arith.constant dense<0.000000e+00> : vector<8xf32>
    %79 = vector.multi_reduction <add>, %78, %cst_28 [1] : vector<8x8xf32> to vector<8xf32>
    %80 = vector.shape_cast %79 : vector<8xf32> to vector<8x1xf32>
    %81 = tpu.reciprocal %80 {approx = true} : vector<8x1xf32> -> vector<8x1xf32>
    %82 = vector.broadcast %81 : vector<8x1xf32> to vector<8x8xf32>
    %83 = arith.mulf %78, %82 : vector<8x8xf32>
    %cst_29 = arith.constant dense<0.000000e+00> : vector<8x8xf32>
    %84 = tpu.matmul %83, %72, %cst_29 {dimension_numbers = #tpu.dot_dimension_numbers<[1], [0], [0], [1], [0, 0, 1, 1], [], []>} : vector<8x8xf32>, vector<8x8xf32>, vector<8x8xf32> -> vector<8x8xf32>
    %c8_30 = arith.constant 8 : index
    %c0_31 = arith.constant 0 : index
    %85 = vector.load %arg7[%c8_30, %c0_31] : memref<16x32xf32, #tpu.memory_space<vmem>>, vector<8x8xf32>
    tpu.vector_store %arg7[%c8_30, %c0_31], %84 {strides = array<i32>} : memref<16x32xf32, #tpu.memory_space<vmem>>, vector<8x8xf32>,
    %86 = vector.extract_strided_slice %5 {offsets = [8, 8], sizes = [8, 8], strides = [1, 1]} : vector<16x96xf32> to vector<8x8xf32>
    %87 = vector.extract_strided_slice %5 {offsets = [8, 40], sizes = [8, 8], strides = [1, 1]} : vector<16x96xf32> to vector<8x8xf32>
    %88 = vector.extract_strided_slice %5 {offsets = [8, 72], sizes = [8, 8], strides = [1, 1]} : vector<16x96xf32> to vector<8x8xf32>
    %cst_32 = arith.constant dense<0.000000e+00> : vector<8x8xf32>
    %89 = tpu.matmul %86, %87, %cst_32 {dimension_numbers = #tpu.dot_dimension_numbers<[1], [1], [0], [0], [0, 0, 1, 0], [], []>} : vector<8x8xf32>, vector<8x8xf32>, vector<8x8xf32> -> vector<8x8xf32>
    %cst_33 = arith.constant dense<0xFF800000> : vector<8xf32>
    %90 = vector.multi_reduction <maximumf>, %89, %cst_33 [1] : vector<8x8xf32> to vector<8xf32>
    %91 = vector.shape_cast %90 : vector<8xf32> to vector<8x1xf32>
    %92 = vector.broadcast %91 : vector<8x1xf32> to vector<8x8xf32>
    %93 = arith.subf %89, %92 : vector<8x8xf32>
    %94 = math.exp %93 : vector<8x8xf32>
    %cst_34 = arith.constant dense<0.000000e+00> : vector<8xf32>
    %95 = vector.multi_reduction <add>, %94, %cst_34 [1] : vector<8x8xf32> to vector<8xf32>
    %96 = vector.shape_cast %95 : vector<8xf32> to vector<8x1xf32>
    %97 = tpu.reciprocal %96 {approx = true} : vector<8x1xf32> -> vector<8x1xf32>
    %98 = vector.broadcast %97 : vector<8x1xf32> to vector<8x8xf32>
    %99 = arith.mulf %94, %98 : vector<8x8xf32>
    %cst_35 = arith.constant dense<0.000000e+00> : vector<8x8xf32>
    %100 = tpu.matmul %99, %88, %cst_35 {dimension_numbers = #tpu.dot_dimension_numbers<[1], [0], [0], [1], [0, 0, 1, 1], [], []>} : vector<8x8xf32>, vector<8x8xf32>, vector<8x8xf32> -> vector<8x8xf32>
    %c8_36 = arith.constant 8 : index
    %c8_37 = arith.constant 8 : index
    %101 = vector.load %arg7[%c8_36, %c8_37] : memref<16x32xf32, #tpu.memory_space<vmem>>, vector<8x8xf32>
    tpu.vector_store %arg7[%c8_36, %c8_37], %100 {strides = array<i32>} : memref<16x32xf32, #tpu.memory_space<vmem>>, vector<8x8xf32>,
    %102 = vector.extract_strided_slice %5 {offsets = [8, 16], sizes = [8, 8], strides = [1, 1]} : vector<16x96xf32> to vector<8x8xf32>
    %103 = vector.extract_strided_slice %5 {offsets = [8, 48], sizes = [8, 8], strides = [1, 1]} : vector<16x96xf32> to vector<8x8xf32>
    %104 = vector.extract_strided_slice %5 {offsets = [8, 80], sizes = [8, 8], strides = [1, 1]} : vector<16x96xf32> to vector<8x8xf32>
    %cst_38 = arith.constant dense<0.000000e+00> : vector<8x8xf32>
    %105 = tpu.matmul %102, %103, %cst_38 {dimension_numbers = #tpu.dot_dimension_numbers<[1], [1], [0], [0], [0, 0, 1, 0], [], []>} : vector<8x8xf32>, vector<8x8xf32>, vector<8x8xf32> -> vector<8x8xf32>
    %cst_39 = arith.constant dense<0xFF800000> : vector<8xf32>
    %106 = vector.multi_reduction <maximumf>, %105, %cst_39 [1] : vector<8x8xf32> to vector<8xf32>
    %107 = vector.shape_cast %106 : vector<8xf32> to vector<8x1xf32>
    %108 = vector.broadcast %107 : vector<8x1xf32> to vector<8x8xf32>
    %109 = arith.subf %105, %108 : vector<8x8xf32>
    %110 = math.exp %109 : vector<8x8xf32>
    %cst_40 = arith.constant dense<0.000000e+00> : vector<8xf32>
    %111 = vector.multi_reduction <add>, %110, %cst_40 [1] : vector<8x8xf32> to vector<8xf32>
    %112 = vector.shape_cast %111 : vector<8xf32> to vector<8x1xf32>
    %113 = tpu.reciprocal %112 {approx = true} : vector<8x1xf32> -> vector<8x1xf32>
    %114 = vector.broadcast %113 : vector<8x1xf32> to vector<8x8xf32>
    %115 = arith.mulf %110, %114 : vector<8x8xf32>
    %cst_41 = arith.constant dense<0.000000e+00> : vector<8x8xf32>
    %116 = tpu.matmul %115, %104, %cst_41 {dimension_numbers = #tpu.dot_dimension_numbers<[1], [0], [0], [1], [0, 0, 1, 1], [], []>} : vector<8x8xf32>, vector<8x8xf32>, vector<8x8xf32> -> vector<8x8xf32>
    %c8_42 = arith.constant 8 : index
    %c16_43 = arith.constant 16 : index
    %117 = vector.load %arg7[%c8_42, %c16_43] : memref<16x32xf32, #tpu.memory_space<vmem>>, vector<8x8xf32>
    tpu.vector_store %arg7[%c8_42, %c16_43], %116 {strides = array<i32>} : memref<16x32xf32, #tpu.memory_space<vmem>>, vector<8x8xf32>,
    %118 = vector.extract_strided_slice %5 {offsets = [8, 24], sizes = [8, 8], strides = [1, 1]} : vector<16x96xf32> to vector<8x8xf32>
    %119 = vector.extract_strided_slice %5 {offsets = [8, 56], sizes = [8, 8], strides = [1, 1]} : vector<16x96xf32> to vector<8x8xf32>
    %120 = vector.extract_strided_slice %5 {offsets = [8, 88], sizes = [8, 8], strides = [1, 1]} : vector<16x96xf32> to vector<8x8xf32>
    %cst_44 = arith.constant dense<0.000000e+00> : vector<8x8xf32>
    %121 = tpu.matmul %118, %119, %cst_44 {dimension_numbers = #tpu.dot_dimension_numbers<[1], [1], [0], [0], [0, 0, 1, 0], [], []>} : vector<8x8xf32>, vector<8x8xf32>, vector<8x8xf32> -> vector<8x8xf32>
    %cst_45 = arith.constant dense<0xFF800000> : vector<8xf32>
    %122 = vector.multi_reduction <maximumf>, %121, %cst_45 [1] : vector<8x8xf32> to vector<8xf32>
    %123 = vector.shape_cast %122 : vector<8xf32> to vector<8x1xf32>
    %124 = vector.broadcast %123 : vector<8x1xf32> to vector<8x8xf32>
    %125 = arith.subf %121, %124 : vector<8x8xf32>
    %126 = math.exp %125 : vector<8x8xf32>
    %cst_46 = arith.constant dense<0.000000e+00> : vector<8xf32>
    %127 = vector.multi_reduction <add>, %126, %cst_46 [1] : vector<8x8xf32> to vector<8xf32>
    %128 = vector.shape_cast %127 : vector<8xf32> to vector<8x1xf32>
    %129 = tpu.reciprocal %128 {approx = true} : vector<8x1xf32> -> vector<8x1xf32>
    %130 = vector.broadcast %129 : vector<8x1xf32> to vector<8x8xf32>
    %131 = arith.mulf %126, %130 : vector<8x8xf32>
    %cst_47 = arith.constant dense<0.000000e+00> : vector<8x8xf32>
    %132 = tpu.matmul %131, %120, %cst_47 {dimension_numbers = #tpu.dot_dimension_numbers<[1], [0], [0], [1], [0, 0, 1, 1], [], []>} : vector<8x8xf32>, vector<8x8xf32>, vector<8x8xf32> -> vector<8x8xf32>
    %c8_48 = arith.constant 8 : index
    %c24_49 = arith.constant 24 : index
    %133 = vector.load %arg7[%c8_48, %c24_49] : memref<16x32xf32, #tpu.memory_space<vmem>>, vector<8x8xf32>
    tpu.vector_store %arg7[%c8_48, %c24_49], %132 {strides = array<i32>} : memref<16x32xf32, #tpu.memory_space<vmem>>, vector<8x8xf32>,
    %c0_50 = arith.constant 0 : index
    %c0_51 = arith.constant 0 : index
    %134 = vector.load %arg7[%c0_50, %c0_51] : memref<16x32xf32, #tpu.memory_space<vmem>>, vector<16x32xf32>
    %c0_52 = arith.constant 0 : index
    %c0_53 = arith.constant 0 : index
    %135 = vector.load %arg4[%c0_52, %c0_53] : memref<32x32xf32, #tpu.memory_space<vmem>>, vector<32x32xf32>
    %cst_54 = arith.constant dense<0.000000e+00> : vector<16x32xf32>
    %136 = tpu.matmul %134, %135, %cst_54 {dimension_numbers = #tpu.dot_dimension_numbers<[1], [0], [0], [1], [0, 0, 1, 1], [], []>} : vector<16x32xf32>, vector<32x32xf32>, vector<16x32xf32> -> vector<16x32xf32>
    %c0_55 = arith.constant 0 : index
    %c0_56 = arith.constant 0 : index
    %137 = vector.load %arg5[%c0_55, %c0_56] : memref<1x32xf32, #tpu.memory_space<vmem>>, vector<1x32xf32>
    %138 = vector.broadcast %137 : vector<1x32xf32> to vector<16x32xf32>
    %139 = arith.addf %136, %138 : vector<16x32xf32>
    %c0_57 = arith.constant 0 : index
    %c0_58 = arith.constant 0 : index
    %140 = vector.load %arg6[%c0_57, %c0_58] : memref<16x32xf32, #tpu.memory_space<vmem>>, vector<16x32xf32>
    tpu.vector_store %arg6[%c0_57, %c0_58], %139 {strides = array<i32>} : memref<16x32xf32, #tpu.memory_space<vmem>>, vector<16x32xf32>,
    return
  }
  func.func @transform_0(%arg0: i32) -> (i32, i32) {
    %c0_i32 = arith.constant 0 : i32
    %c0_i32_0 = arith.constant 0 : i32
    %c0_i32_1 = arith.constant 0 : i32
    return %c0_i32, %c0_i32_0 : i32, i32
  }
  func.func @transform_1(%arg0: i32) -> (i32, i32) {
    %c0_i32 = arith.constant 0 : i32
    %c0_i32_0 = arith.constant 0 : i32
    %c0_i32_1 = arith.constant 0 : i32
    return %c0_i32, %c0_i32_0 : i32, i32
  }
  func.func @transform_2(%arg0: i32) -> (i32, i32) {
    %c0_i32 = arith.constant 0 : i32
    %c0_i32_0 = arith.constant 0 : i32
    %c0_i32_1 = arith.constant 0 : i32
    return %c0_i32, %c0_i32_0 : i32, i32
  }
  func.func @transform_3(%arg0: i32) -> (i32, i32) {
    %c0_i32 = arith.constant 0 : i32
    %c0_i32_0 = arith.constant 0 : i32
    %c0_i32_1 = arith.constant 0 : i32
    return %c0_i32, %c0_i32_0 : i32, i32
  }
  func.func @transform_4(%arg0: i32) -> (i32, i32) {
    %c0_i32 = arith.constant 0 : i32
    %c0_i32_0 = arith.constant 0 : i32
    %c0_i32_1 = arith.constant 0 : i32
    return %c0_i32, %c0_i32_0 : i32, i32
  }
  func.func @transform_5(%arg0: i32) -> (i32, i32) {
    %c0_i32 = arith.constant 0 : i32
    %c0_i32_0 = arith.constant 0 : i32
    %c0_i32_1 = arith.constant 0 : i32
    return %c0_i32, %c0_i32_0 : i32, i32
  }
}

</mosaic_0001>

<llo_original>
// kernel: tpu_custom_call.1
$region0: #{tpu_custom_call.1}
  #allocation0 [shape = 'u32[]', space=smem, size = 0x4, offset = 0x4, fixed_abs, tag = 'smem constant byte address 0x4 - core index']
  #allocation1 [shape = 'u32[144,128]{1,0:T(1,128)}', space=vmem, size = 0x12000, scoped, tag = 'internal scratch']
  #allocation2 [shape = 'f32[16,32]{1,0:T(8,128)}', space=vmem, size = 0x2000, scoped, tag = 'scratch operand']
  %s0 = inlined_call_operand.hbm [shape: f32[16,32], index: 0, kind: input, shape index: {}]
  %s1 = inlined_call_operand.hbm [shape: f32[32,96], index: 1, kind: input, shape index: {}]
  %s2 = inlined_call_operand.vmem [shape: f32[1,96], index: 2, kind: input, shape index: {}]
  %s3 = inlined_call_operand.hbm [shape: f32[32,32], index: 3, kind: input, shape index: {}]
  %s4 = inlined_call_operand.vmem [shape: f32[1,32], index: 4, kind: input, shape index: {}]
  %s5 = inlined_call_operand.hbm [shape: f32[16,32], index: 5, kind: output, shape index: {}]
  %s6 = sld [smem:[#allocation0]]
  $region42: #{tpu_custom_call.1} parent=0
    _
  %s8 = ssub.s32 1, %s6
  %s9 = scalar_select 0, %s8, %s6
  $region1: #{tpu_custom_call.1} parent=0
    #allocation3 [shape = 'u8[8192]{0}', space=vmem, size = 0x2000, scoped, tag = 'input window, operand 0, single buffered']
    #allocation4 [shape = 's32[1]{0}', space=sflag, size = 0x4, scoped, tag = 'scoped memory for tpu_custom_call.1']
    #allocation5 [shape = 's32[1]{0}', space=sflag, size = 0x4, scoped, tag = 'scoped memory for tpu_custom_call.1']
    #allocation6 [shape = 'u8[16384]{0}', space=vmem, size = 0x4000, scoped, tag = 'input window, operand 1, single buffered']
    #allocation7 [shape = 's32[1]{0}', space=sflag, size = 0x4, scoped, tag = 'scoped memory for tpu_custom_call.1']
    #allocation8 [shape = 'u8[16384]{0}', space=vmem, size = 0x4000, scoped, tag = 'input window, operand 3, single buffered']
    #allocation9 [shape = 'u8[8192]{0}', space=vmem, size = 0x2000, scoped, tag = 'output window, operand 0, single buffered']
    %10 = vsyncpa [#allocation4], 0
    %11 = vsyncpa [#allocation7], 0
    %12 = vsyncpa [#allocation5], 0
    // Predicated region
    $region2: #{tpu_custom_call.1} parent=1 // pred_check
      _
    $region3: #{tpu_custom_call.1} parent=1 // pred_check_branch
      %14 = sbr.rel (0) target = $region5
    $region4: #{tpu_custom_call.1} parent=1 // pred_region
      %s16 = ssub.s32 256, 256
      %17 = vsyncadd [#allocation4], %s16
      %s18 = sshll.u32 [#allocation3], 4
      %s19 = int_to_ptr.vmem [resolvable:$true] %s18
      %24 = dma.hbm_to_vmem [thread:$0]  %s0, 256, %s19, [#allocation4], 128, 128, 8
    $region5: #{tpu_custom_call.1} parent=1 // pred_fallthru
      _
    // Predicated region
    $region6: #{tpu_custom_call.1} parent=1 // pred_check
      _
    $region7: #{tpu_custom_call.1} parent=1 // pred_check_branch
      %26 = sbr.rel (0) target = $region9
    $region8: #{tpu_custom_call.1} parent=1 // pred_region
      %s28 = ssub.s32 512, 512
      %29 = vsyncadd [#allocation7], %s28
      %s30 = sshll.u32 [#allocation6], 4
      %s31 = int_to_ptr.vmem [resolvable:$true] %s30
      %36 = dma.hbm_to_vmem [thread:$0]  %s1, 512, %s31, [#allocation7], 128, 128, 8
    $region9: #{tpu_custom_call.1} parent=1 // pred_fallthru
      _
    // Predicated region
    $region10: #{tpu_custom_call.1} parent=1 // pred_check
      _
    $region11: #{tpu_custom_call.1} parent=1 // pred_check_branch
      %38 = sbr.rel (0) target = $region13
    $region12: #{tpu_custom_call.1} parent=1 // pred_region
      _
    $region13: #{tpu_custom_call.1} parent=1 // pred_fallthru
      _
    // Predicated region
    $region14: #{tpu_custom_call.1} parent=1 // pred_check
      _
    $region15: #{tpu_custom_call.1} parent=1 // pred_check_branch
      %40 = sbr.rel (0) target = $region17
    $region16: #{tpu_custom_call.1} parent=1 // pred_region
      %s42 = ssub.s32 512, 512
      %43 = vsyncadd [#allocation7], %s42
      %s44 = sshll.u32 [#allocation8], 4
      %s45 = int_to_ptr.vmem [resolvable:$true] %s44
      %50 = dma.hbm_to_vmem [thread:$0]  %s3, 512, %s45, [#allocation7], 128, 128, 8
    $region17: #{tpu_custom_call.1} parent=1 // pred_fallthru
      _
    // Predicated region
    $region18: #{tpu_custom_call.1} parent=1 // pred_check
      _
    $region19: #{tpu_custom_call.1} parent=1 // pred_check_branch
      %52 = sbr.rel (0) target = $region21
    $region20: #{tpu_custom_call.1} parent=1 // pred_region
      _
    $region21: #{tpu_custom_call.1} parent=1 // pred_fallthru
      _
    // Predicated region
    $region22: #{tpu_custom_call.1} parent=1 // pred_check
      _
    $region23: #{tpu_custom_call.1} parent=1 // pred_check_branch
      %54 = sbr.rel (0) target = $region25
    $region24: #{tpu_custom_call.1} parent=1 // pred_region
      %55 = dma.done [#allocation4], 256
    $region25: #{tpu_custom_call.1} parent=1 // pred_fallthru
      _
    // Predicated region
    $region26: #{tpu_custom_call.1} parent=1 // pred_check
      _
    $region27: #{tpu_custom_call.1} parent=1 // pred_check_branch
      %57 = sbr.rel (0) target = $region29
    $region28: #{tpu_custom_call.1} parent=1 // pred_region
      %58 = dma.done [#allocation7], 512
    $region29: #{tpu_custom_call.1} parent=1 // pred_fallthru
      _
    // Predicated region
    $region30: #{tpu_custom_call.1} parent=1 // pred_check
      _
    $region31: #{tpu_custom_call.1} parent=1 // pred_check_branch
      %60 = sbr.rel (0) target = $region33
    $region32: #{tpu_custom_call.1} parent=1 // pred_region
      %61 = dma.done [#allocation7], 512
    $region33: #{tpu_custom_call.1} parent=1 // pred_fallthru
      _
    %v62 = vld [vmem:[#allocation3] sm:$0xff]
    %v63 = vld [vmem:[#allocation3 + $0x8] sm:$0xff]
    %v64 = vld [vmem:[#allocation6] sm:$0xff]
    %v65 = vld [vmem:[#allocation6 + $0x8] sm:$0xff]
    %v66 = vld [vmem:[#allocation6 + $0x10] sm:$0xff]
    %v67 = vld [vmem:[#allocation6 + $0x18] sm:$0xff]
    %v68 = vld [vmem:[%s2] sm:$0x1]
    %v70 = vlaneseq
    %v71 = vshrl.u32 %v70, 7
    %v72 = vsub.s32 0, %v71
    %v73 = vrot.slane %v68, %v72
    %vm75 = vcmask 261120
    %v77 = vsel %vm75, %v62, 0
    %v80 = vsel %vm75, %v63, 0
    %82 = vmatprep.subr.mxu0 0.0
    %83 = vmatpush1.msra.mxu0 %v64
    %84 = vmatprep.subr.mxu0 0.0
    %85 = vmatpush1.msra.mxu0 %v65
    %86 = vmatprep.subr.mxu0 0.0
    %87 = vmatpush1.msra.mxu0 %v66
    %88 = vmatprep.subr.mxu0 0.0
    %89 = vmatpush1.msra.mxu0 %v67
    %90 = vmatprep.subr.mxu0 0.0
    %91 = vmatpush1.msra.mxu0 0.0
    %92 = vmatprep.subr.mxu0 0.0
    %93 = vmatpush1.msra.mxu0 0.0
    %94 = vmatprep.subr.mxu0 0.0
    %95 = vmatpush1.msra.mxu0 0.0
    %96 = vmatprep.subr.mxu0 0.0
    %97 = vmatpush1.msra.mxu0 0.0
    %98 = vmatprep.subr.mxu0 0.0
    %99 = vmatpush1.msra.mxu0 0.0
    %100 = vmatprep.subr.mxu0 0.0
    %101 = vmatpush1.msra.mxu0 0.0
    %102 = vmatprep.subr.mxu0 0.0
    %103 = vmatpush1.msra.mxu0 0.0
    %104 = vmatprep.subr.mxu0 0.0
    %105 = vmatpush1.msra.mxu0 0.0
    %106 = vmatprep.subr.mxu0 0.0
    %107 = vmatpush1.msra.mxu0 0.0
    %108 = vmatprep.subr.mxu0 0.0
    %109 = vmatpush1.msra.mxu0 0.0
    %110 = vmatprep.subr.mxu0 0.0
    %111 = vmatpush1.msra.mxu0 0.0
    %112 = vmatprep.subr.mxu0 0.0
    %113 = vmatpush1.msra.mxu0 0.0
    %114 = vmatprep.subr.mxu0 0.0
    %115 = vmatpush1.msra.mxu0 0.0
    %116 = vmatprep.subr.mxu0 0.0
    %117 = vmatpush1.msra.mxu0 0.0
    %118 = vmatprep.subr.mxu0 0.0
    %119 = vmatpush1.msra.mxu0 0.0
    %120 = vmatprep.subr.mxu0 0.0
    %121 = vmatpush1.msra.mxu0 0.0
    %122 = vmatprep.subr.mxu0 0.0
    %123 = vmatpush1.msra.mxu0 0.0
    %124 = vmatprep.subr.mxu0 0.0
    %125 = vmatpush1.msra.mxu0 0.0
    %126 = vmatprep.subr.mxu0 0.0
    %127 = vmatpush1.msra.mxu0 0.0
    %128 = vmatprep.subr.mxu0 0.0
    %129 = vmatpush1.msra.mxu0 0.0
    %130 = vmatprep.subr.mxu0 0.0
    %131 = vmatpush1.msra.mxu0 0.0
    %132 = vmatprep.subr.mxu0 0.0
    %133 = vmatpush1.msra.mxu0 0.0
    %134 = vmatprep.subr.mxu0 0.0
    %135 = vmatpush1.msra.mxu0 0.0
    %136 = vmatprep.subr.mxu0 0.0
    %137 = vmatpush1.msra.mxu0 0.0
    %138 = vmatprep.subr.mxu0 0.0
    %139 = vmatpush1.msra.mxu0 0.0
    %140 = vmatprep.subr.mxu0 0.0
    %141 = vmatpush1.msra.mxu0 0.0
    %142 = vmatprep.subr.mxu0 0.0
    %143 = vmatpush1.msra.mxu0 0.0
    %144 = vmatprep.subr.mxu0 0.0
    %145 = vmatpush1.msra.mxu0 0.0
    %146 = vmatprep.mubr.f32.mxu0 0.0
    %147 = vmatmul.mubr.f32.gmra.mrb[0].mxu0 %v77
    %v148 = vpop.f32.mrb[0].mxu0
    %v149 = vadd.f32 %v73, %v148
    %v150 = vpop.f32.mrb[0].mxu0
    %151 = vmatprep.mubr.f32.mxu0 0.0
    %152 = vmatmul.mubr.f32.gmra.mrb[0].mxu0 %v80
    %v153 = vpop.f32.mrb[0].mxu0
    %v154 = vadd.f32 %v73, %v153
    %v155 = vpop.f32.mrb[0].mxu0
    %156 = vdwg.mxu0
    %158 = vrot.lane.b32.xlu0 %v149, 96
    %v159 = vpop.permute.xlu0 %158
    %vm160 = vcmask 64512
    %v161 = vsel %vm160, %v149, 0
    %v163 = vsel %vm160, %v159, 0
    %165 = vmatprep.subr.mxu0 0.0
    %166 = vmatpush1.xpose.msra.mxu0 %v163
    %167 = vmatprep.subr.mxu0 0.0
    %168 = vmatpush1.xpose.msra.mxu0 0.0
    %169 = vmatprep.subr.mxu0 0.0
    %170 = vmatpush1.xpose.msra.mxu0 0.0
    %171 = vmatprep.subr.mxu0 0.0
    %172 = vmatpush1.xpose.msra.mxu0 0.0
    %173 = vmatprep.subr.mxu0 0.0
    %174 = vmatpush1.xpose.msra.mxu0 0.0
    %175 = vmatprep.subr.mxu0 0.0
    %176 = vmatpush1.xpose.msra.mxu0 0.0
    %177 = vmatprep.subr.mxu0 0.0
    %178 = vmatpush1.xpose.msra.mxu0 0.0
    %179 = vmatprep.subr.mxu0 0.0
    %180 = vmatpush1.xpose.msra.mxu0 0.0
    %181 = vmatprep.subr.mxu0 0.0
    %182 = vmatpush1.xpose.msra.mxu0 0.0
    %183 = vmatprep.subr.mxu0 0.0
    %184 = vmatpush1.xpose.msra.mxu0 0.0
    %185 = vmatprep.subr.mxu0 0.0
    %186 = vmatpush1.xpose.msra.mxu0 0.0
    %187 = vmatprep.subr.mxu0 0.0
    %188 = vmatpush1.xpose.msra.mxu0 0.0
    %189 = vmatprep.subr.mxu0 0.0
    %190 = vmatpush1.xpose.msra.mxu0 0.0
    %191 = vmatprep.subr.mxu0 0.0
    %192 = vmatpush1.xpose.msra.mxu0 0.0
    %193 = vmatprep.subr.mxu0 0.0
    %194 = vmatpush1.xpose.msra.mxu0 0.0
    %195 = vmatprep.subr.mxu0 0.0
    %196 = vmatpush1.xpose.msra.mxu0 0.0
    %197 = vmatprep.subr.mxu0 0.0
    %198 = vmatpush1.xpose.msra.mxu0 0.0
    %199 = vmatprep.subr.mxu0 0.0
    %200 = vmatpush1.xpose.msra.mxu0 0.0
    %201 = vmatprep.subr.mxu0 0.0
    %202 = vmatpush1.xpose.msra.mxu0 0.0
    %203 = vmatprep.subr.mxu0 0.0
    %204 = vmatpush1.xpose.msra.mxu0 0.0
    %205 = vmatprep.subr.mxu0 0.0
    %206 = vmatpush1.xpose.msra.mxu0 0.0
    %207 = vmatprep.subr.mxu0 0.0
    %208 = vmatpush1.xpose.msra.mxu0 0.0
    %209 = vmatprep.subr.mxu0 0.0
    %210 = vmatpush1.xpose.msra.mxu0 0.0
    %211 = vmatprep.subr.mxu0 0.0
    %212 = vmatpush1.xpose.msra.mxu0 0.0
    %213 = vmatprep.subr.mxu0 0.0
    %214 = vmatpush1.xpose.msra.mxu0 0.0
    %215 = vmatprep.subr.mxu0 0.0
    %216 = vmatpush1.xpose.msra.mxu0 0.0
    %217 = vmatprep.subr.mxu0 0.0
    %218 = vmatpush1.xpose.msra.mxu0 0.0
    %219 = vmatprep.subr.mxu0 0.0
    %220 = vmatpush1.xpose.msra.mxu0 0.0
    %221 = vmatprep.subr.mxu0 0.0
    %222 = vmatpush1.xpose.msra.mxu0 0.0
    %223 = vmatprep.subr.mxu0 0.0
    %224 = vmatpush1.xpose.msra.mxu0 0.0
    %225 = vmatprep.subr.mxu0 0.0
    %226 = vmatpush1.xpose.msra.mxu0 0.0
    %227 = vmatprep.subr.mxu0 0.0
    %228 = vmatpush1.xpose.msra.mxu0 0.0
    %229 = vmatprep.mubr.f32.mxu0 0.0
    %230 = vmatmul.mubr.f32.gmra.mrb[0].mxu0 %v161
    %v231 = vpop.f32.mrb[0].mxu0
    %v232 = vadd.f32 0.0, %v231
    %v233 = vpop.f32.mrb[0].mxu0
    %234 = vdwg.mxu0
    %v235 = vsel %vm160, %v232, -inf
    %236 = vmax.xlane.f32.xlu0 %v235
    %v237 = vpop.xlane.xlu0 %236
    %v238 = vsub.f32 %v232, %v237
    %v239 = vmul.f32 %v238, 1.442695
    %v240 = vpow.pop %v239
    %v241 = vsel %vm160, %v240, 0.0
    %242 = vadd.xlane.f32.xlu0 %v241
    %v243 = vpop.xlane.xlu0 %242
    %v244 = vrcp.pop %v243
    %v245 = vmul.f32 %v240, %v244
    %246 = vrot.lane.b32.xlu0 %v149, 64
    %v247 = vpop.permute.xlu0 %246
    %v250 = vsel %vm160, %v245, 0
    %252 = vmatprep.subr.mxu0 0.0
    %253 = vmatpush1.msra.mxu0 %v247
    %254 = vmatprep.subr.mxu0 0.0
    %255 = vmatpush1.msra.mxu0 0.0
    %256 = vmatprep.subr.mxu0 0.0
    %257 = vmatpush1.msra.mxu0 0.0
    %258 = vmatprep.subr.mxu0 0.0
    %259 = vmatpush1.msra.mxu0 0.0
    %260 = vmatprep.subr.mxu0 0.0
    %261 = vmatpush1.msra.mxu0 0.0
    %262 = vmatprep.subr.mxu0 0.0
    %263 = vmatpush1.msra.mxu0 0.0
    %264 = vmatprep.subr.mxu0 0.0
    %265 = vmatpush1.msra.mxu0 0.0
    %266 = vmatprep.subr.mxu0 0.0
    %267 = vmatpush1.msra.mxu0 0.0
    %268 = vmatprep.subr.mxu0 0.0
    %269 = vmatpush1.msra.mxu0 0.0
    %270 = vmatprep.subr.mxu0 0.0
    %271 = vmatpush1.msra.mxu0 0.0
    %272 = vmatprep.subr.mxu0 0.0
    %273 = vmatpush1.msra.mxu0 0.0
    %274 = vmatprep.subr.mxu0 0.0
    %275 = vmatpush1.msra.mxu0 0.0
    %276 = vmatprep.subr.mxu0 0.0
    %277 = vmatpush1.msra.mxu0 0.0
    %278 = vmatprep.subr.mxu0 0.0
    %279 = vmatpush1.msra.mxu0 0.0
    %280 = vmatprep.subr.mxu0 0.0
    %281 = vmatpush1.msra.mxu0 0.0
    %282 = vmatprep.subr.mxu0 0.0
    %283 = vmatpush1.msra.mxu0 0.0
    %284 = vmatprep.subr.mxu0 0.0
    %285 = vmatpush1.msra.mxu0 0.0
    %286 = vmatprep.subr.mxu0 0.0
    %287 = vmatpush1.msra.mxu0 0.0
    %288 = vmatprep.subr.mxu0 0.0
    %289 = vmatpush1.msra.mxu0 0.0
    %290 = vmatprep.subr.mxu0 0.0
    %291 = vmatpush1.msra.mxu0 0.0
    %292 = vmatprep.subr.mxu0 0.0
    %293 = vmatpush1.msra.mxu0 0.0
    %294 = vmatprep.subr.mxu0 0.0
    %295 = vmatpush1.msra.mxu0 0.0
    %296 = vmatprep.subr.mxu0 0.0
    %297 = vmatpush1.msra.mxu0 0.0
    %298 = vmatprep.subr.mxu0 0.0
    %299 = vmatpush1.msra.mxu0 0.0
    %300 = vmatprep.subr.mxu0 0.0
    %301 = vmatpush1.msra.mxu0 0.0
    %302 = vmatprep.subr.mxu0 0.0
    %303 = vmatpush1.msra.mxu0 0.0
    %304 = vmatprep.subr.mxu0 0.0
    %305 = vmatpush1.msra.mxu0 0.0
    %306 = vmatprep.subr.mxu0 0.0
    %307 = vmatpush1.msra.mxu0 0.0
    %308 = vmatprep.subr.mxu0 0.0
    %309 = vmatpush1.msra.mxu0 0.0
    %310 = vmatprep.subr.mxu0 0.0
    %311 = vmatpush1.msra.mxu0 0.0
    %312 = vmatprep.subr.mxu0 0.0
    %313 = vmatpush1.msra.mxu0 0.0
    %314 = vmatprep.subr.mxu0 0.0
    %315 = vmatpush1.msra.mxu0 0.0
    %316 = vmatprep.mubr.f32.mxu0 0.0
    %317 = vmatmul.mubr.f32.gmra.mrb[0].mxu0 %v250
    %v318 = vpop.f32.mrb[0].mxu0
    %v319 = vadd.f32 0.0, %v318
    %v320 = vpop.f32.mrb[0].mxu0
    %321 = vdwg.mxu0
    %322 = vst.msk [vmem:[#allocation2] sm:$0xff] %vm160, %v319
    %323 = vrot.lane.b32.xlu0 %v149, 120
    %v324 = vpop.permute.xlu0 %323
    %325 = vrot.lane.b32.xlu0 %v149, 88
    %v326 = vpop.permute.xlu0 %325
    %v327 = vsel %vm160, %v324, 0
    %v329 = vsel %vm160, %v326, 0
    %331 = vmatprep.subr.mxu0 0.0
    %332 = vmatpush1.xpose.msra.mxu0 %v329
    %333 = vmatprep.subr.mxu0 0.0
    %334 = vmatpush1.xpose.msra.mxu0 0.0
    %335 = vmatprep.subr.mxu0 0.0
    %336 = vmatpush1.xpose.msra.mxu0 0.0
    %337 = vmatprep.subr.mxu0 0.0
    %338 = vmatpush1.xpose.msra.mxu0 0.0
    %339 = vmatprep.subr.mxu0 0.0
    %340 = vmatpush1.xpose.msra.mxu0 0.0
    %341 = vmatprep.subr.mxu0 0.0
    %342 = vmatpush1.xpose.msra.mxu0 0.0
    %343 = vmatprep.subr.mxu0 0.0
    %344 = vmatpush1.xpose.msra.mxu0 0.0
    %345 = vmatprep.subr.mxu0 0.0
    %346 = vmatpush1.xpose.msra.mxu0 0.0
    %347 = vmatprep.subr.mxu0 0.0
    %348 = vmatpush1.xpose.msra.mxu0 0.0
    %349 = vmatprep.subr.mxu0 0.0
    %350 = vmatpush1.xpose.msra.mxu0 0.0
    %351 = vmatprep.subr.mxu0 0.0
    %352 = vmatpush1.xpose.msra.mxu0 0.0
    %353 = vmatprep.subr.mxu0 0.0
    %354 = vmatpush1.xpose.msra.mxu0 0.0
    %355 = vmatprep.subr.mxu0 0.0
    %356 = vmatpush1.xpose.msra.mxu0 0.0
    %357 = vmatprep.subr.mxu0 0.0
    %358 = vmatpush1.xpose.msra.mxu0 0.0
    %359 = vmatprep.subr.mxu0 0.0
    %360 = vmatpush1.xpose.msra.mxu0 0.0
    %361 = vmatprep.subr.mxu0 0.0
    %362 = vmatpush1.xpose.msra.mxu0 0.0
    %363 = vmatprep.subr.mxu0 0.0
    %364 = vmatpush1.xpose.msra.mxu0 0.0
    %365 = vmatprep.subr.mxu0 0.0
    %366 = vmatpush1.xpose.msra.mxu0 0.0
    %367 = vmatprep.subr.mxu0 0.0
    %368 = vmatpush1.xpose.msra.mxu0 0.0
    %369 = vmatprep.subr.mxu0 0.0
    %370 = vmatpush1.xpose.msra.mxu0 0.0
    %371 = vmatprep.subr.mxu0 0.0
    %372 = vmatpush1.xpose.msra.mxu0 0.0
    %373 = vmatprep.subr.mxu0 0.0
    %374 = vmatpush1.xpose.msra.mxu0 0.0
    %375 = vmatprep.subr.mxu0 0.0
    %376 = vmatpush1.xpose.msra.mxu0 0.0
    %377 = vmatprep.subr.mxu0 0.0
    %378 = vmatpush1.xpose.msra.mxu0 0.0
    %379 = vmatprep.subr.mxu0 0.0
    %380 = vmatpush1.xpose.msra.mxu0 0.0
    %381 = vmatprep.subr.mxu0 0.0
    %382 = vmatpush1.xpose.msra.mxu0 0.0
    %383 = vmatprep.subr.mxu0 0.0
    %384 = vmatpush1.xpose.msra.mxu0 0.0
    %385 = vmatprep.subr.mxu0 0.0
    %386 = vmatpush1.xpose.msra.mxu0 0.0
    %387 = vmatprep.subr.mxu0 0.0
    %388 = vmatpush1.xpose.msra.mxu0 0.0
    %389 = vmatprep.subr.mxu0 0.0
    %390 = vmatpush1.xpose.msra.mxu0 0.0
    %391 = vmatprep.subr.mxu0 0.0
    %392 = vmatpush1.xpose.msra.mxu0 0.0
    %393 = vmatprep.subr.mxu0 0.0
    %394 = vmatpush1.xpose.msra.mxu0 0.0
    %395 = vmatprep.mubr.f32.mxu0 0.0
    %396 = vmatmul.mubr.f32.gmra.mrb[0].mxu0 %v327
    %v397 = vpop.f32.mrb[0].mxu0
    %v398 = vadd.f32 0.0, %v397
    %v399 = vpop.f32.mrb[0].mxu0
    %400 = vdwg.mxu0
    %v401 = vsel %vm160, %v398, -inf
    %402 = vmax.xlane.f32.xlu0 %v401
    %v403 = vpop.xlane.xlu0 %402
    %v404 = vsub.f32 %v398, %v403
    %v405 = vmul.f32 %v404, 1.442695
    %v406 = vpow.pop %v405
    %v407 = vsel %vm160, %v406, 0.0
    %408 = vadd.xlane.f32.xlu0 %v407
    %v409 = vpop.xlane.xlu0 %408
    %v410 = vrcp.pop %v409
    %v411 = vmul.f32 %v406, %v410
    %412 = vrot.lane.b32.xlu0 %v149, 56
    %v413 = vpop.permute.xlu0 %412
    %v416 = vsel %vm160, %v411, 0
    %418 = vmatprep.subr.mxu0 0.0
    %419 = vmatpush1.msra.mxu0 %v413
    %420 = vmatprep.subr.mxu0 0.0
    %421 = vmatpush1.msra.mxu0 0.0
    %422 = vmatprep.subr.mxu0 0.0
    %423 = vmatpush1.msra.mxu0 0.0
    %424 = vmatprep.subr.mxu0 0.0
    %425 = vmatpush1.msra.mxu0 0.0
    %426 = vmatprep.subr.mxu0 0.0
    %427 = vmatpush1.msra.mxu0 0.0
    %428 = vmatprep.subr.mxu0 0.0
    %429 = vmatpush1.msra.mxu0 0.0
    %430 = vmatprep.subr.mxu0 0.0
    %431 = vmatpush1.msra.mxu0 0.0
    %432 = vmatprep.subr.mxu0 0.0
    %433 = vmatpush1.msra.mxu0 0.0
    %434 = vmatprep.subr.mxu0 0.0
    %435 = vmatpush1.msra.mxu0 0.0
    %436 = vmatprep.subr.mxu0 0.0
    %437 = vmatpush1.msra.mxu0 0.0
    %438 = vmatprep.subr.mxu0 0.0
    %439 = vmatpush1.msra.mxu0 0.0
    %440 = vmatprep.subr.mxu0 0.0
    %441 = vmatpush1.msra.mxu0 0.0
    %442 = vmatprep.subr.mxu0 0.0
    %443 = vmatpush1.msra.mxu0 0.0
    %444 = vmatprep.subr.mxu0 0.0
    %445 = vmatpush1.msra.mxu0 0.0
    %446 = vmatprep.subr.mxu0 0.0
    %447 = vmatpush1.msra.mxu0 0.0
    %448 = vmatprep.subr.mxu0 0.0
    %449 = vmatpush1.msra.mxu0 0.0
    %450 = vmatprep.subr.mxu0 0.0
    %451 = vmatpush1.msra.mxu0 0.0
    %452 = vmatprep.subr.mxu0 0.0
    %453 = vmatpush1.msra.mxu0 0.0
    %454 = vmatprep.subr.mxu0 0.0
    %455 = vmatpush1.msra.mxu0 0.0
    %456 = vmatprep.subr.mxu0 0.0
    %457 = vmatpush1.msra.mxu0 0.0
    %458 = vmatprep.subr.mxu0 0.0
    %459 = vmatpush1.msra.mxu0 0.0
    %460 = vmatprep.subr.mxu0 0.0
    %461 = vmatpush1.msra.mxu0 0.0
    %462 = vmatprep.subr.mxu0 0.0
    %463 = vmatpush1.msra.mxu0 0.0
    %464 = vmatprep.subr.mxu0 0.0
    %465 = vmatpush1.msra.mxu0 0.0
    %466 = vmatprep.subr.mxu0 0.0
    %467 = vmatpush1.msra.mxu0 0.0
    %468 = vmatprep.subr.mxu0 0.0
    %469 = vmatpush1.msra.mxu0 0.0
    %470 = vmatprep.subr.mxu0 0.0
    %471 = vmatpush1.msra.mxu0 0.0
    %472 = vmatprep.subr.mxu0 0.0
    %473 = vmatpush1.msra.mxu0 0.0
    %474 = vmatprep.subr.mxu0 0.0
    %475 = vmatpush1.msra.mxu0 0.0
    %476 = vmatprep.subr.mxu0 0.0
    %477 = vmatpush1.msra.mxu0 0.0
    %478 = vmatprep.subr.mxu0 0.0
    %479 = vmatpush1.msra.mxu0 0.0
    %480 = vmatprep.subr.mxu0 0.0
    %481 = vmatpush1.msra.mxu0 0.0
    %482 = vmatprep.mubr.f32.mxu0 0.0
    %483 = vmatmul.mubr.f32.gmra.mrb[0].mxu0 %v416
    %v484 = vpop.f32.mrb[0].mxu0
    %v485 = vadd.f32 0.0, %v484
    %v486 = vpop.f32.mrb[0].mxu0
    %487 = vdwg.mxu0
    %489 = vrot.lane.b32.xlu0 %v485, 8
    %v490 = vpop.permute.xlu0 %489
    %vm492 = vcmask 130112
    %493 = vst.msk [vmem:[#allocation2] sm:$0xff] %vm492, %v490
    %494 = vrot.lane.b32.xlu0 %v149, 112
    %v495 = vpop.permute.xlu0 %494
    %496 = vrot.lane.b32.xlu0 %v149, 80
    %v497 = vpop.permute.xlu0 %496
    %v498 = vsel %vm160, %v495, 0
    %v500 = vsel %vm160, %v497, 0
    %502 = vmatprep.subr.mxu0 0.0
    %503 = vmatpush1.xpose.msra.mxu0 %v500
    %504 = vmatprep.subr.mxu0 0.0
    %505 = vmatpush1.xpose.msra.mxu0 0.0
    %506 = vmatprep.subr.mxu0 0.0
    %507 = vmatpush1.xpose.msra.mxu0 0.0
    %508 = vmatprep.subr.mxu0 0.0
    %509 = vmatpush1.xpose.msra.mxu0 0.0
    %510 = vmatprep.subr.mxu0 0.0
    %511 = vmatpush1.xpose.msra.mxu0 0.0
    %512 = vmatprep.subr.mxu0 0.0
    %513 = vmatpush1.xpose.msra.mxu0 0.0
    %514 = vmatprep.subr.mxu0 0.0
    %515 = vmatpush1.xpose.msra.mxu0 0.0
    %516 = vmatprep.subr.mxu0 0.0
    %517 = vmatpush1.xpose.msra.mxu0 0.0
    %518 = vmatprep.subr.mxu0 0.0
    %519 = vmatpush1.xpose.msra.mxu0 0.0
    %520 = vmatprep.subr.mxu0 0.0
    %521 = vmatpush1.xpose.msra.mxu0 0.0
    %522 = vmatprep.subr.mxu0 0.0
    %523 = vmatpush1.xpose.msra.mxu0 0.0
    %524 = vmatprep.subr.mxu0 0.0
    %525 = vmatpush1.xpose.msra.mxu0 0.0
    %526 = vmatprep.subr.mxu0 0.0
    %527 = vmatpush1.xpose.msra.mxu0 0.0
    %528 = vmatprep.subr.mxu0 0.0
    %529 = vmatpush1.xpose.msra.mxu0 0.0
    %530 = vmatprep.subr.mxu0 0.0
    %531 = vmatpush1.xpose.msra.mxu0 0.0
    %532 = vmatprep.subr.mxu0 0.0
    %533 = vmatpush1.xpose.msra.mxu0 0.0
    %534 = vmatprep.subr.mxu0 0.0
    %535 = vmatpush1.xpose.msra.mxu0 0.0
    %536 = vmatprep.subr.mxu0 0.0
    %537 = vmatpush1.xpose.msra.mxu0 0.0
    %538 = vmatprep.subr.mxu0 0.0
    %539 = vmatpush1.xpose.msra.mxu0 0.0
    %540 = vmatprep.subr.mxu0 0.0
    %541 = vmatpush1.xpose.msra.mxu0 0.0
    %542 = vmatprep.subr.mxu0 0.0
    %543 = vmatpush1.xpose.msra.mxu0 0.0
    %544 = vmatprep.subr.mxu0 0.0
    %545 = vmatpush1.xpose.msra.mxu0 0.0
    %546 = vmatprep.subr.mxu0 0.0
    %547 = vmatpush1.xpose.msra.mxu0 0.0
    %548 = vmatprep.subr.mxu0 0.0
    %549 = vmatpush1.xpose.msra.mxu0 0.0
    %550 = vmatprep.subr.mxu0 0.0
    %551 = vmatpush1.xpose.msra.mxu0 0.0
    %552 = vmatprep.subr.mxu0 0.0
    %553 = vmatpush1.xpose.msra.mxu0 0.0
    %554 = vmatprep.subr.mxu0 0.0
    %555 = vmatpush1.xpose.msra.mxu0 0.0
    %556 = vmatprep.subr.mxu0 0.0
    %557 = vmatpush1.xpose.msra.mxu0 0.0
    %558 = vmatprep.subr.mxu0 0.0
    %559 = vmatpush1.xpose.msra.mxu0 0.0
    %560 = vmatprep.subr.mxu0 0.0
    %561 = vmatpush1.xpose.msra.mxu0 0.0
    %562 = vmatprep.subr.mxu0 0.0
    %563 = vmatpush1.xpose.msra.mxu0 0.0
    %564 = vmatprep.subr.mxu0 0.0
    %565 = vmatpush1.xpose.msra.mxu0 0.0
    %566 = vmatprep.mubr.f32.mxu0 0.0
    %567 = vmatmul.mubr.f32.gmra.mrb[0].mxu0 %v498
    %v568 = vpop.f32.mrb[0].mxu0
    %v569 = vadd.f32 0.0, %v568
    %v570 = vpop.f32.mrb[0].mxu0
    %571 = vdwg.mxu0
    %v572 = vsel %vm160, %v569, -inf
    %573 = vmax.xlane.f32.xlu0 %v572
    %v574 = vpop.xlane.xlu0 %573
    %v575 = vsub.f32 %v569, %v574
    %v576 = vmul.f32 %v575, 1.442695
    %v577 = vpow.pop %v576
    %v578 = vsel %vm160, %v577, 0.0
    %579 = vadd.xlane.f32.xlu0 %v578
    %v580 = vpop.xlane.xlu0 %579
    %v581 = vrcp.pop %v580
    %v582 = vmul.f32 %v577, %v581
    %583 = vrot.lane.b32.xlu0 %v149, 48
    %v584 = vpop.permute.xlu0 %583
    %v587 = vsel %vm160, %v582, 0
    %589 = vmatprep.subr.mxu0 0.0
    %590 = vmatpush1.msra.mxu0 %v584
    %591 = vmatprep.subr.mxu0 0.0
    %592 = vmatpush1.msra.mxu0 0.0
    %593 = vmatprep.subr.mxu0 0.0
    %594 = vmatpush1.msra.mxu0 0.0
    %595 = vmatprep.subr.mxu0 0.0
    %596 = vmatpush1.msra.mxu0 0.0
    %597 = vmatprep.subr.mxu0 0.0
    %598 = vmatpush1.msra.mxu0 0.0
    %599 = vmatprep.subr.mxu0 0.0
    %600 = vmatpush1.msra.mxu0 0.0
    %601 = vmatprep.subr.mxu0 0.0
    %602 = vmatpush1.msra.mxu0 0.0
    %603 = vmatprep.subr.mxu0 0.0
    %604 = vmatpush1.msra.mxu0 0.0
    %605 = vmatprep.subr.mxu0 0.0
    %606 = vmatpush1.msra.mxu0 0.0
    %607 = vmatprep.subr.mxu0 0.0
    %608 = vmatpush1.msra.mxu0 0.0
    %609 = vmatprep.subr.mxu0 0.0
    %610 = vmatpush1.msra.mxu0 0.0
    %611 = vmatprep.subr.mxu0 0.0
    %612 = vmatpush1.msra.mxu0 0.0
    %613 = vmatprep.subr.mxu0 0.0
    %614 = vmatpush1.msra.mxu0 0.0
    %615 = vmatprep.subr.mxu0 0.0
    %616 = vmatpush1.msra.mxu0 0.0
    %617 = vmatprep.subr.mxu0 0.0
    %618 = vmatpush1.msra.mxu0 0.0
    %619 = vmatprep.subr.mxu0 0.0
    %620 = vmatpush1.msra.mxu0 0.0
    %621 = vmatprep.subr.mxu0 0.0
    %622 = vmatpush1.msra.mxu0 0.0
    %623 = vmatprep.subr.mxu0 0.0
    %624 = vmatpush1.msra.mxu0 0.0
    %625 = vmatprep.subr.mxu0 0.0
    %626 = vmatpush1.msra.mxu0 0.0
    %627 = vmatprep.subr.mxu0 0.0
    %628 = vmatpush1.msra.mxu0 0.0
    %629 = vmatprep.subr.mxu0 0.0
    %630 = vmatpush1.msra.mxu0 0.0
    %631 = vmatprep.subr.mxu0 0.0
    %632 = vmatpush1.msra.mxu0 0.0
    %633 = vmatprep.subr.mxu0 0.0
    %634 = vmatpush1.msra.mxu0 0.0
    %635 = vmatprep.subr.mxu0 0.0
    %636 = vmatpush1.msra.mxu0 0.0
    %637 = vmatprep.subr.mxu0 0.0
    %638 = vmatpush1.msra.mxu0 0.0
    %639 = vmatprep.subr.mxu0 0.0
    %640 = vmatpush1.msra.mxu0 0.0
    %641 = vmatprep.subr.mxu0 0.0
    %642 = vmatpush1.msra.mxu0 0.0
    %643 = vmatprep.subr.mxu0 0.0
    %644 = vmatpush1.msra.mxu0 0.0
    %645 = vmatprep.subr.mxu0 0.0
    %646 = vmatpush1.msra.mxu0 0.0
    %647 = vmatprep.subr.mxu0 0.0
    %648 = vmatpush1.msra.mxu0 0.0
    %649 = vmatprep.subr.mxu0 0.0
    %650 = vmatpush1.msra.mxu0 0.0
    %651 = vmatprep.subr.mxu0 0.0
    %652 = vmatpush1.msra.mxu0 0.0
    %653 = vmatprep.mubr.f32.mxu0 0.0
    %654 = vmatmul.mubr.f32.gmra.mrb[0].mxu0 %v587
    %v655 = vpop.f32.mrb[0].mxu0
    %v656 = vadd.f32 0.0, %v655
    %v657 = vpop.f32.mrb[0].mxu0
    %658 = vdwg.mxu0
    %660 = vrot.lane.b32.xlu0 %v656, 16
    %v661 = vpop.permute.xlu0 %660
    %vm663 = vcmask 195712
    %664 = vst.msk [vmem:[#allocation2] sm:$0xff] %vm663, %v661
    %665 = vrot.lane.b32.xlu0 %v149, 104
    %v666 = vpop.permute.xlu0 %665
    %667 = vrot.lane.b32.xlu0 %v149, 72
    %v668 = vpop.permute.xlu0 %667
    %v669 = vsel %vm160, %v666, 0
    %v671 = vsel %vm160, %v668, 0
    %673 = vmatprep.subr.mxu0 0.0
    %674 = vmatpush1.xpose.msra.mxu0 %v671
    %675 = vmatprep.subr.mxu0 0.0
    %676 = vmatpush1.xpose.msra.mxu0 0.0
    %677 = vmatprep.subr.mxu0 0.0
    %678 = vmatpush1.xpose.msra.mxu0 0.0
    %679 = vmatprep.subr.mxu0 0.0
    %680 = vmatpush1.xpose.msra.mxu0 0.0
    %681 = vmatprep.subr.mxu0 0.0
    %682 = vmatpush1.xpose.msra.mxu0 0.0
    %683 = vmatprep.subr.mxu0 0.0
    %684 = vmatpush1.xpose.msra.mxu0 0.0
    %685 = vmatprep.subr.mxu0 0.0
    %686 = vmatpush1.xpose.msra.mxu0 0.0
    %687 = vmatprep.subr.mxu0 0.0
    %688 = vmatpush1.xpose.msra.mxu0 0.0
    %689 = vmatprep.subr.mxu0 0.0
    %690 = vmatpush1.xpose.msra.mxu0 0.0
    %691 = vmatprep.subr.mxu0 0.0
    %692 = vmatpush1.xpose.msra.mxu0 0.0
    %693 = vmatprep.subr.mxu0 0.0
    %694 = vmatpush1.xpose.msra.mxu0 0.0
    %695 = vmatprep.subr.mxu0 0.0
    %696 = vmatpush1.xpose.msra.mxu0 0.0
    %697 = vmatprep.subr.mxu0 0.0
    %698 = vmatpush1.xpose.msra.mxu0 0.0
    %699 = vmatprep.subr.mxu0 0.0
    %700 = vmatpush1.xpose.msra.mxu0 0.0
    %701 = vmatprep.subr.mxu0 0.0
    %702 = vmatpush1.xpose.msra.mxu0 0.0
    %703 = vmatprep.subr.mxu0 0.0
    %704 = vmatpush1.xpose.msra.mxu0 0.0
    %705 = vmatprep.subr.mxu0 0.0
    %706 = vmatpush1.xpose.msra.mxu0 0.0
    %707 = vmatprep.subr.mxu0 0.0
    %708 = vmatpush1.xpose.msra.mxu0 0.0
    %709 = vmatprep.subr.mxu0 0.0
    %710 = vmatpush1.xpose.msra.mxu0 0.0
    %711 = vmatprep.subr.mxu0 0.0
    %712 = vmatpush1.xpose.msra.mxu0 0.0
    %713 = vmatprep.subr.mxu0 0.0
    %714 = vmatpush1.xpose.msra.mxu0 0.0
    %715 = vmatprep.subr.mxu0 0.0
    %716 = vmatpush1.xpose.msra.mxu0 0.0
    %717 = vmatprep.subr.mxu0 0.0
    %718 = vmatpush1.xpose.msra.mxu0 0.0
    %719 = vmatprep.subr.mxu0 0.0
    %720 = vmatpush1.xpose.msra.mxu0 0.0
    %721 = vmatprep.subr.mxu0 0.0
    %722 = vmatpush1.xpose.msra.mxu0 0.0
    %723 = vmatprep.subr.mxu0 0.0
    %724 = vmatpush1.xpose.msra.mxu0 0.0
    %725 = vmatprep.subr.mxu0 0.0
    %726 = vmatpush1.xpose.msra.mxu0 0.0
    %727 = vmatprep.subr.mxu0 0.0
    %728 = vmatpush1.xpose.msra.mxu0 0.0
    %729 = vmatprep.subr.mxu0 0.0
    %730 = vmatpush1.xpose.msra.mxu0 0.0
    %731 = vmatprep.subr.mxu0 0.0
    %732 = vmatpush1.xpose.msra.mxu0 0.0
    %733 = vmatprep.subr.mxu0 0.0
    %734 = vmatpush1.xpose.msra.mxu0 0.0
    %735 = vmatprep.subr.mxu0 0.0
    %736 = vmatpush1.xpose.msra.mxu0 0.0
    %737 = vmatprep.mubr.f32.mxu0 0.0
    %738 = vmatmul.mubr.f32.gmra.mrb[0].mxu0 %v669
    %v739 = vpop.f32.mrb[0].mxu0
    %v740 = vadd.f32 0.0, %v739
    %v741 = vpop.f32.mrb[0].mxu0
    %742 = vdwg.mxu0
    %v743 = vsel %vm160, %v740, -inf
    %744 = vmax.xlane.f32.xlu0 %v743
    %v745 = vpop.xlane.xlu0 %744
    %v746 = vsub.f32 %v740, %v745
    %v747 = vmul.f32 %v746, 1.442695
    %v748 = vpow.pop %v747
    %v749 = vsel %vm160, %v748, 0.0
    %750 = vadd.xlane.f32.xlu0 %v749
    %v751 = vpop.xlane.xlu0 %750
    %v752 = vrcp.pop %v751
    %v753 = vmul.f32 %v748, %v752
    %754 = vrot.lane.b32.xlu0 %v149, 40
    %v755 = vpop.permute.xlu0 %754
    %v758 = vsel %vm160, %v753, 0
    %760 = vmatprep.subr.mxu0 0.0
    %761 = vmatpush1.msra.mxu0 %v755
    %762 = vmatprep.subr.mxu0 0.0
    %763 = vmatpush1.msra.mxu0 0.0
    %764 = vmatprep.subr.mxu0 0.0
    %765 = vmatpush1.msra.mxu0 0.0
    %766 = vmatprep.subr.mxu0 0.0
    %767 = vmatpush1.msra.mxu0 0.0
    %768 = vmatprep.subr.mxu0 0.0
    %769 = vmatpush1.msra.mxu0 0.0
    %770 = vmatprep.subr.mxu0 0.0
    %771 = vmatpush1.msra.mxu0 0.0
    %772 = vmatprep.subr.mxu0 0.0
    %773 = vmatpush1.msra.mxu0 0.0
    %774 = vmatprep.subr.mxu0 0.0
    %775 = vmatpush1.msra.mxu0 0.0
    %776 = vmatprep.subr.mxu0 0.0
    %777 = vmatpush1.msra.mxu0 0.0
    %778 = vmatprep.subr.mxu0 0.0
    %779 = vmatpush1.msra.mxu0 0.0
    %780 = vmatprep.subr.mxu0 0.0
    %781 = vmatpush1.msra.mxu0 0.0
    %782 = vmatprep.subr.mxu0 0.0
    %783 = vmatpush1.msra.mxu0 0.0
    %784 = vmatprep.subr.mxu0 0.0
    %785 = vmatpush1.msra.mxu0 0.0
    %786 = vmatprep.subr.mxu0 0.0
    %787 = vmatpush1.msra.mxu0 0.0
    %788 = vmatprep.subr.mxu0 0.0
    %789 = vmatpush1.msra.mxu0 0.0
    %790 = vmatprep.subr.mxu0 0.0
    %791 = vmatpush1.msra.mxu0 0.0
    %792 = vmatprep.subr.mxu0 0.0
    %793 = vmatpush1.msra.mxu0 0.0
    %794 = vmatprep.subr.mxu0 0.0
    %795 = vmatpush1.msra.mxu0 0.0
    %796 = vmatprep.subr.mxu0 0.0
    %797 = vmatpush1.msra.mxu0 0.0
    %798 = vmatprep.subr.mxu0 0.0
    %799 = vmatpush1.msra.mxu0 0.0
    %800 = vmatprep.subr.mxu0 0.0
    %801 = vmatpush1.msra.mxu0 0.0
    %802 = vmatprep.subr.mxu0 0.0
    %803 = vmatpush1.msra.mxu0 0.0
    %804 = vmatprep.subr.mxu0 0.0
    %805 = vmatpush1.msra.mxu0 0.0
    %806 = vmatprep.subr.mxu0 0.0
    %807 = vmatpush1.msra.mxu0 0.0
    %808 = vmatprep.subr.mxu0 0.0
    %809 = vmatpush1.msra.mxu0 0.0
    %810 = vmatprep.subr.mxu0 0.0
    %811 = vmatpush1.msra.mxu0 0.0
    %812 = vmatprep.subr.mxu0 0.0
    %813 = vmatpush1.msra.mxu0 0.0
    %814 = vmatprep.subr.mxu0 0.0
    %815 = vmatpush1.msra.mxu0 0.0
    %816 = vmatprep.subr.mxu0 0.0
    %817 = vmatpush1.msra.mxu0 0.0
    %818 = vmatprep.subr.mxu0 0.0
    %819 = vmatpush1.msra.mxu0 0.0
    %820 = vmatprep.subr.mxu0 0.0
    %821 = vmatpush1.msra.mxu0 0.0
    %822 = vmatprep.subr.mxu0 0.0
    %823 = vmatpush1.msra.mxu0 0.0
    %824 = vmatprep.mubr.f32.mxu0 0.0
    %825 = vmatmul.mubr.f32.gmra.mrb[0].mxu0 %v758
    %v826 = vpop.f32.mrb[0].mxu0
    %v827 = vadd.f32 0.0, %v826
    %v828 = vpop.f32.mrb[0].mxu0
    %829 = vdwg.mxu0
    %831 = vrot.lane.b32.xlu0 %v827, 24
    %v832 = vpop.permute.xlu0 %831
    %vm834 = vcmask 261312
    %835 = vst.msk [vmem:[#allocation2] sm:$0xff] %vm834, %v832
    %837 = vrot.lane.b32.xlu0 %v154, 96
    %v838 = vpop.permute.xlu0 %837
    %v839 = vsel %vm160, %v154, 0
    %v841 = vsel %vm160, %v838, 0
    %843 = vmatprep.subr.mxu0 0.0
    %844 = vmatpush1.xpose.msra.mxu0 %v841
    %845 = vmatprep.subr.mxu0 0.0
    %846 = vmatpush1.xpose.msra.mxu0 0.0
    %847 = vmatprep.subr.mxu0 0.0
    %848 = vmatpush1.xpose.msra.mxu0 0.0
    %849 = vmatprep.subr.mxu0 0.0
    %850 = vmatpush1.xpose.msra.mxu0 0.0
    %851 = vmatprep.subr.mxu0 0.0
    %852 = vmatpush1.xpose.msra.mxu0 0.0
    %853 = vmatprep.subr.mxu0 0.0
    %854 = vmatpush1.xpose.msra.mxu0 0.0
    %855 = vmatprep.subr.mxu0 0.0
    %856 = vmatpush1.xpose.msra.mxu0 0.0
    %857 = vmatprep.subr.mxu0 0.0
    %858 = vmatpush1.xpose.msra.mxu0 0.0
    %859 = vmatprep.subr.mxu0 0.0
    %860 = vmatpush1.xpose.msra.mxu0 0.0
    %861 = vmatprep.subr.mxu0 0.0
    %862 = vmatpush1.xpose.msra.mxu0 0.0
    %863 = vmatprep.subr.mxu0 0.0
    %864 = vmatpush1.xpose.msra.mxu0 0.0
    %865 = vmatprep.subr.mxu0 0.0
    %866 = vmatpush1.xpose.msra.mxu0 0.0
    %867 = vmatprep.subr.mxu0 0.0
    %868 = vmatpush1.xpose.msra.mxu0 0.0
    %869 = vmatprep.subr.mxu0 0.0
    %870 = vmatpush1.xpose.msra.mxu0 0.0
    %871 = vmatprep.subr.mxu0 0.0
    %872 = vmatpush1.xpose.msra.mxu0 0.0
    %873 = vmatprep.subr.mxu0 0.0
    %874 = vmatpush1.xpose.msra.mxu0 0.0
    %875 = vmatprep.subr.mxu0 0.0
    %876 = vmatpush1.xpose.msra.mxu0 0.0
    %877 = vmatprep.subr.mxu0 0.0
    %878 = vmatpush1.xpose.msra.mxu0 0.0
    %879 = vmatprep.subr.mxu0 0.0
    %880 = vmatpush1.xpose.msra.mxu0 0.0
    %881 = vmatprep.subr.mxu0 0.0
    %882 = vmatpush1.xpose.msra.mxu0 0.0
    %883 = vmatprep.subr.mxu0 0.0
    %884 = vmatpush1.xpose.msra.mxu0 0.0
    %885 = vmatprep.subr.mxu0 0.0
    %886 = vmatpush1.xpose.msra.mxu0 0.0
    %887 = vmatprep.subr.mxu0 0.0
    %888 = vmatpush1.xpose.msra.mxu0 0.0
    %889 = vmatprep.subr.mxu0 0.0
    %890 = vmatpush1.xpose.msra.mxu0 0.0
    %891 = vmatprep.subr.mxu0 0.0
    %892 = vmatpush1.xpose.msra.mxu0 0.0
    %893 = vmatprep.subr.mxu0 0.0
    %894 = vmatpush1.xpose.msra.mxu0 0.0
    %895 = vmatprep.subr.mxu0 0.0
    %896 = vmatpush1.xpose.msra.mxu0 0.0
    %897 = vmatprep.subr.mxu0 0.0
    %898 = vmatpush1.xpose.msra.mxu0 0.0
    %899 = vmatprep.subr.mxu0 0.0
    %900 = vmatpush1.xpose.msra.mxu0 0.0
    %901 = vmatprep.subr.mxu0 0.0
    %902 = vmatpush1.xpose.msra.mxu0 0.0
    %903 = vmatprep.subr.mxu0 0.0
    %904 = vmatpush1.xpose.msra.mxu0 0.0
    %905 = vmatprep.subr.mxu0 0.0
    %906 = vmatpush1.xpose.msra.mxu0 0.0
    %907 = vmatprep.mubr.f32.mxu0 0.0
    %908 = vmatmul.mubr.f32.gmra.mrb[0].mxu0 %v839
    %v909 = vpop.f32.mrb[0].mxu0
    %v910 = vadd.f32 0.0, %v909
    %v911 = vpop.f32.mrb[0].mxu0
    %912 = vdwg.mxu0
    %v913 = vsel %vm160, %v910, -inf
    %914 = vmax.xlane.f32.xlu0 %v913
    %v915 = vpop.xlane.xlu0 %914
    %v916 = vsub.f32 %v910, %v915
    %v917 = vmul.f32 %v916, 1.442695
    %v918 = vpow.pop %v917
    %v919 = vsel %vm160, %v918, 0.0
    %920 = vadd.xlane.f32.xlu0 %v919
    %v921 = vpop.xlane.xlu0 %920
    %v922 = vrcp.pop %v921
    %v923 = vmul.f32 %v918, %v922
    %924 = vrot.lane.b32.xlu0 %v154, 64
    %v925 = vpop.permute.xlu0 %924
    %v928 = vsel %vm160, %v923, 0
    %930 = vmatprep.subr.mxu0 0.0
    %931 = vmatpush1.msra.mxu0 %v925
    %932 = vmatprep.subr.mxu0 0.0
    %933 = vmatpush1.msra.mxu0 0.0
    %934 = vmatprep.subr.mxu0 0.0
    %935 = vmatpush1.msra.mxu0 0.0
    %936 = vmatprep.subr.mxu0 0.0
    %937 = vmatpush1.msra.mxu0 0.0
    %938 = vmatprep.subr.mxu0 0.0
    %939 = vmatpush1.msra.mxu0 0.0
    %940 = vmatprep.subr.mxu0 0.0
    %941 = vmatpush1.msra.mxu0 0.0
    %942 = vmatprep.subr.mxu0 0.0
    %943 = vmatpush1.msra.mxu0 0.0
    %944 = vmatprep.subr.mxu0 0.0
    %945 = vmatpush1.msra.mxu0 0.0
    %946 = vmatprep.subr.mxu0 0.0
    %947 = vmatpush1.msra.mxu0 0.0
    %948 = vmatprep.subr.mxu0 0.0
    %949 = vmatpush1.msra.mxu0 0.0
    %950 = vmatprep.subr.mxu0 0.0
    %951 = vmatpush1.msra.mxu0 0.0
    %952 = vmatprep.subr.mxu0 0.0
    %953 = vmatpush1.msra.mxu0 0.0
    %954 = vmatprep.subr.mxu0 0.0
    %955 = vmatpush1.msra.mxu0 0.0
    %956 = vmatprep.subr.mxu0 0.0
    %957 = vmatpush1.msra.mxu0 0.0
    %958 = vmatprep.subr.mxu0 0.0
    %959 = vmatpush1.msra.mxu0 0.0
    %960 = vmatprep.subr.mxu0 0.0
    %961 = vmatpush1.msra.mxu0 0.0
    %962 = vmatprep.subr.mxu0 0.0
    %963 = vmatpush1.msra.mxu0 0.0
    %964 = vmatprep.subr.mxu0 0.0
    %965 = vmatpush1.msra.mxu0 0.0
    %966 = vmatprep.subr.mxu0 0.0
    %967 = vmatpush1.msra.mxu0 0.0
    %968 = vmatprep.subr.mxu0 0.0
    %969 = vmatpush1.msra.mxu0 0.0
    %970 = vmatprep.subr.mxu0 0.0
    %971 = vmatpush1.msra.mxu0 0.0
    %972 = vmatprep.subr.mxu0 0.0
    %973 = vmatpush1.msra.mxu0 0.0
    %974 = vmatprep.subr.mxu0 0.0
    %975 = vmatpush1.msra.mxu0 0.0
    %976 = vmatprep.subr.mxu0 0.0
    %977 = vmatpush1.msra.mxu0 0.0
    %978 = vmatprep.subr.mxu0 0.0
    %979 = vmatpush1.msra.mxu0 0.0
    %980 = vmatprep.subr.mxu0 0.0
    %981 = vmatpush1.msra.mxu0 0.0
    %982 = vmatprep.subr.mxu0 0.0
    %983 = vmatpush1.msra.mxu0 0.0
    %984 = vmatprep.subr.mxu0 0.0
    %985 = vmatpush1.msra.mxu0 0.0
    %986 = vmatprep.subr.mxu0 0.0
    %987 = vmatpush1.msra.mxu0 0.0
    %988 = vmatprep.subr.mxu0 0.0
    %989 = vmatpush1.msra.mxu0 0.0
    %990 = vmatprep.subr.mxu0 0.0
    %991 = vmatpush1.msra.mxu0 0.0
    %992 = vmatprep.subr.mxu0 0.0
    %993 = vmatpush1.msra.mxu0 0.0
    %994 = vmatprep.mubr.f32.mxu0 0.0
    %995 = vmatmul.mubr.f32.gmra.mrb[0].mxu0 %v928
    %v996 = vpop.f32.mrb[0].mxu0
    %v997 = vadd.f32 0.0, %v996
    %v998 = vpop.f32.mrb[0].mxu0
    %999 = vdwg.mxu0
    %1000 = vst.msk [vmem:[#allocation2 + $0x8] sm:$0xff] %vm160, %v997
    %1001 = vrot.lane.b32.xlu0 %v154, 120
    %v1002 = vpop.permute.xlu0 %1001
    %1003 = vrot.lane.b32.xlu0 %v154, 88
    %v1004 = vpop.permute.xlu0 %1003
    %v1005 = vsel %vm160, %v1002, 0
    %v1007 = vsel %vm160, %v1004, 0
    %1009 = vmatprep.subr.mxu0 0.0
    %1010 = vmatpush1.xpose.msra.mxu0 %v1007
    %1011 = vmatprep.subr.mxu0 0.0
    %1012 = vmatpush1.xpose.msra.mxu0 0.0
    %1013 = vmatprep.subr.mxu0 0.0
    %1014 = vmatpush1.xpose.msra.mxu0 0.0
    %1015 = vmatprep.subr.mxu0 0.0
    %1016 = vmatpush1.xpose.msra.mxu0 0.0
    %1017 = vmatprep.subr.mxu0 0.0
    %1018 = vmatpush1.xpose.msra.mxu0 0.0
    %1019 = vmatprep.subr.mxu0 0.0
    %1020 = vmatpush1.xpose.msra.mxu0 0.0
    %1021 = vmatprep.subr.mxu0 0.0
    %1022 = vmatpush1.xpose.msra.mxu0 0.0
    %1023 = vmatprep.subr.mxu0 0.0
    %1024 = vmatpush1.xpose.msra.mxu0 0.0
    %1025 = vmatprep.subr.mxu0 0.0
    %1026 = vmatpush1.xpose.msra.mxu0 0.0
    %1027 = vmatprep.subr.mxu0 0.0
    %1028 = vmatpush1.xpose.msra.mxu0 0.0
    %1029 = vmatprep.subr.mxu0 0.0
    %1030 = vmatpush1.xpose.msra.mxu0 0.0
    %1031 = vmatprep.subr.mxu0 0.0
    %1032 = vmatpush1.xpose.msra.mxu0 0.0
    %1033 = vmatprep.subr.mxu0 0.0
    %1034 = vmatpush1.xpose.msra.mxu0 0.0
    %1035 = vmatprep.subr.mxu0 0.0
    %1036 = vmatpush1.xpose.msra.mxu0 0.0
    %1037 = vmatprep.subr.mxu0 0.0
    %1038 = vmatpush1.xpose.msra.mxu0 0.0
    %1039 = vmatprep.subr.mxu0 0.0
    %1040 = vmatpush1.xpose.msra.mxu0 0.0
    %1041 = vmatprep.subr.mxu0 0.0
    %1042 = vmatpush1.xpose.msra.mxu0 0.0
    %1043 = vmatprep.subr.mxu0 0.0
    %1044 = vmatpush1.xpose.msra.mxu0 0.0
    %1045 = vmatprep.subr.mxu0 0.0
    %1046 = vmatpush1.xpose.msra.mxu0 0.0
    %1047 = vmatprep.subr.mxu0 0.0
    %1048 = vmatpush1.xpose.msra.mxu0 0.0
    %1049 = vmatprep.subr.mxu0 0.0
    %1050 = vmatpush1.xpose.msra.mxu0 0.0
    %1051 = vmatprep.subr.mxu0 0.0
    %1052 = vmatpush1.xpose.msra.mxu0 0.0
    %1053 = vmatprep.subr.mxu0 0.0
    %1054 = vmatpush1.xpose.msra.mxu0 0.0
    %1055 = vmatprep.subr.mxu0 0.0
    %1056 = vmatpush1.xpose.msra.mxu0 0.0
    %1057 = vmatprep.subr.mxu0 0.0
    %1058 = vmatpush1.xpose.msra.mxu0 0.0
    %1059 = vmatprep.subr.mxu0 0.0
    %1060 = vmatpush1.xpose.msra.mxu0 0.0
    %1061 = vmatprep.subr.mxu0 0.0
    %1062 = vmatpush1.xpose.msra.mxu0 0.0
    %1063 = vmatprep.subr.mxu0 0.0
    %1064 = vmatpush1.xpose.msra.mxu0 0.0
    %1065 = vmatprep.subr.mxu0 0.0
    %1066 = vmatpush1.xpose.msra.mxu0 0.0
    %1067 = vmatprep.subr.mxu0 0.0
    %1068 = vmatpush1.xpose.msra.mxu0 0.0
    %1069 = vmatprep.subr.mxu0 0.0
    %1070 = vmatpush1.xpose.msra.mxu0 0.0
    %1071 = vmatprep.subr.mxu0 0.0
    %1072 = vmatpush1.xpose.msra.mxu0 0.0
    %1073 = vmatprep.mubr.f32.mxu0 0.0
    %1074 = vmatmul.mubr.f32.gmra.mrb[0].mxu0 %v1005
    %v1075 = vpop.f32.mrb[0].mxu0
    %v1076 = vadd.f32 0.0, %v1075
    %v1077 = vpop.f32.mrb[0].mxu0
    %1078 = vdwg.mxu0
    %v1079 = vsel %vm160, %v1076, -inf
    %1080 = vmax.xlane.f32.xlu0 %v1079
    %v1081 = vpop.xlane.xlu0 %1080
    %v1082 = vsub.f32 %v1076, %v1081
    %v1083 = vmul.f32 %v1082, 1.442695
    %v1084 = vpow.pop %v1083
    %v1085 = vsel %vm160, %v1084, 0.0
    %1086 = vadd.xlane.f32.xlu0 %v1085
    %v1087 = vpop.xlane.xlu0 %1086
    %v1088 = vrcp.pop %v1087
    %v1089 = vmul.f32 %v1084, %v1088
    %1090 = vrot.lane.b32.xlu0 %v154, 56
    %v1091 = vpop.permute.xlu0 %1090
    %v1094 = vsel %vm160, %v1089, 0
    %1096 = vmatprep.subr.mxu0 0.0
    %1097 = vmatpush1.msra.mxu0 %v1091
    %1098 = vmatprep.subr.mxu0 0.0
    %1099 = vmatpush1.msra.mxu0 0.0
    %1100 = vmatprep.subr.mxu0 0.0
    %1101 = vmatpush1.msra.mxu0 0.0
    %1102 = vmatprep.subr.mxu0 0.0
    %1103 = vmatpush1.msra.mxu0 0.0
    %1104 = vmatprep.subr.mxu0 0.0
    %1105 = vmatpush1.msra.mxu0 0.0
    %1106 = vmatprep.subr.mxu0 0.0
    %1107 = vmatpush1.msra.mxu0 0.0
    %1108 = vmatprep.subr.mxu0 0.0
    %1109 = vmatpush1.msra.mxu0 0.0
    %1110 = vmatprep.subr.mxu0 0.0
    %1111 = vmatpush1.msra.mxu0 0.0
    %1112 = vmatprep.subr.mxu0 0.0
    %1113 = vmatpush1.msra.mxu0 0.0
    %1114 = vmatprep.subr.mxu0 0.0
    %1115 = vmatpush1.msra.mxu0 0.0
    %1116 = vmatprep.subr.mxu0 0.0
    %1117 = vmatpush1.msra.mxu0 0.0
    %1118 = vmatprep.subr.mxu0 0.0
    %1119 = vmatpush1.msra.mxu0 0.0
    %1120 = vmatprep.subr.mxu0 0.0
    %1121 = vmatpush1.msra.mxu0 0.0
    %1122 = vmatprep.subr.mxu0 0.0
    %1123 = vmatpush1.msra.mxu0 0.0
    %1124 = vmatprep.subr.mxu0 0.0
    %1125 = vmatpush1.msra.mxu0 0.0
    %1126 = vmatprep.subr.mxu0 0.0
    %1127 = vmatpush1.msra.mxu0 0.0
    %1128 = vmatprep.subr.mxu0 0.0
    %1129 = vmatpush1.msra.mxu0 0.0
    %1130 = vmatprep.subr.mxu0 0.0
    %1131 = vmatpush1.msra.mxu0 0.0
    %1132 = vmatprep.subr.mxu0 0.0
    %1133 = vmatpush1.msra.mxu0 0.0
    %1134 = vmatprep.subr.mxu0 0.0
    %1135 = vmatpush1.msra.mxu0 0.0
    %1136 = vmatprep.subr.mxu0 0.0
    %1137 = vmatpush1.msra.mxu0 0.0
    %1138 = vmatprep.subr.mxu0 0.0
    %1139 = vmatpush1.msra.mxu0 0.0
    %1140 = vmatprep.subr.mxu0 0.0
    %1141 = vmatpush1.msra.mxu0 0.0
    %1142 = vmatprep.subr.mxu0 0.0
    %1143 = vmatpush1.msra.mxu0 0.0
    %1144 = vmatprep.subr.mxu0 0.0
    %1145 = vmatpush1.msra.mxu0 0.0
    %1146 = vmatprep.subr.mxu0 0.0
    %1147 = vmatpush1.msra.mxu0 0.0
    %1148 = vmatprep.subr.mxu0 0.0
    %1149 = vmatpush1.msra.mxu0 0.0
    %1150 = vmatprep.subr.mxu0 0.0
    %1151 = vmatpush1.msra.mxu0 0.0
    %1152 = vmatprep.subr.mxu0 0.0
    %1153 = vmatpush1.msra.mxu0 0.0
    %1154 = vmatprep.subr.mxu0 0.0
    %1155 = vmatpush1.msra.mxu0 0.0
    %1156 = vmatprep.subr.mxu0 0.0
    %1157 = vmatpush1.msra.mxu0 0.0
    %1158 = vmatprep.subr.mxu0 0.0
    %1159 = vmatpush1.msra.mxu0 0.0
    %1160 = vmatprep.mubr.f32.mxu0 0.0
    %1161 = vmatmul.mubr.f32.gmra.mrb[0].mxu0 %v1094
    %v1162 = vpop.f32.mrb[0].mxu0
    %v1163 = vadd.f32 0.0, %v1162
    %v1164 = vpop.f32.mrb[0].mxu0
    %1165 = vdwg.mxu0
    %1167 = vrot.lane.b32.xlu0 %v1163, 8
    %v1168 = vpop.permute.xlu0 %1167
    %1170 = vst.msk [vmem:[#allocation2 + $0x8] sm:$0xff] %vm492, %v1168
    %1171 = vrot.lane.b32.xlu0 %v154, 112
    %v1172 = vpop.permute.xlu0 %1171
    %1173 = vrot.lane.b32.xlu0 %v154, 80
    %v1174 = vpop.permute.xlu0 %1173
    %v1175 = vsel %vm160, %v1172, 0
    %v1177 = vsel %vm160, %v1174, 0
    %1179 = vmatprep.subr.mxu0 0.0
    %1180 = vmatpush1.xpose.msra.mxu0 %v1177
    %1181 = vmatprep.subr.mxu0 0.0
    %1182 = vmatpush1.xpose.msra.mxu0 0.0
    %1183 = vmatprep.subr.mxu0 0.0
    %1184 = vmatpush1.xpose.msra.mxu0 0.0
    %1185 = vmatprep.subr.mxu0 0.0
    %1186 = vmatpush1.xpose.msra.mxu0 0.0
    %1187 = vmatprep.subr.mxu0 0.0
    %1188 = vmatpush1.xpose.msra.mxu0 0.0
    %1189 = vmatprep.subr.mxu0 0.0
    %1190 = vmatpush1.xpose.msra.mxu0 0.0
    %1191 = vmatprep.subr.mxu0 0.0
    %1192 = vmatpush1.xpose.msra.mxu0 0.0
    %1193 = vmatprep.subr.mxu0 0.0
    %1194 = vmatpush1.xpose.msra.mxu0 0.0
    %1195 = vmatprep.subr.mxu0 0.0
    %1196 = vmatpush1.xpose.msra.mxu0 0.0
    %1197 = vmatprep.subr.mxu0 0.0
    %1198 = vmatpush1.xpose.msra.mxu0 0.0
    %1199 = vmatprep.subr.mxu0 0.0
    %1200 = vmatpush1.xpose.msra.mxu0 0.0
    %1201 = vmatprep.subr.mxu0 0.0
    %1202 = vmatpush1.xpose.msra.mxu0 0.0
    %1203 = vmatprep.subr.mxu0 0.0
    %1204 = vmatpush1.xpose.msra.mxu0 0.0
    %1205 = vmatprep.subr.mxu0 0.0
    %1206 = vmatpush1.xpose.msra.mxu0 0.0
    %1207 = vmatprep.subr.mxu0 0.0
    %1208 = vmatpush1.xpose.msra.mxu0 0.0
    %1209 = vmatprep.subr.mxu0 0.0
    %1210 = vmatpush1.xpose.msra.mxu0 0.0
    %1211 = vmatprep.subr.mxu0 0.0
    %1212 = vmatpush1.xpose.msra.mxu0 0.0
    %1213 = vmatprep.subr.mxu0 0.0
    %1214 = vmatpush1.xpose.msra.mxu0 0.0
    %1215 = vmatprep.subr.mxu0 0.0
    %1216 = vmatpush1.xpose.msra.mxu0 0.0
    %1217 = vmatprep.subr.mxu0 0.0
    %1218 = vmatpush1.xpose.msra.mxu0 0.0
    %1219 = vmatprep.subr.mxu0 0.0
    %1220 = vmatpush1.xpose.msra.mxu0 0.0
    %1221 = vmatprep.subr.mxu0 0.0
    %1222 = vmatpush1.xpose.msra.mxu0 0.0
    %1223 = vmatprep.subr.mxu0 0.0
    %1224 = vmatpush1.xpose.msra.mxu0 0.0
    %1225 = vmatprep.subr.mxu0 0.0
    %1226 = vmatpush1.xpose.msra.mxu0 0.0
    %1227 = vmatprep.subr.mxu0 0.0
    %1228 = vmatpush1.xpose.msra.mxu0 0.0
    %1229 = vmatprep.subr.mxu0 0.0
    %1230 = vmatpush1.xpose.msra.mxu0 0.0
    %1231 = vmatprep.subr.mxu0 0.0
    %1232 = vmatpush1.xpose.msra.mxu0 0.0
    %1233 = vmatprep.subr.mxu0 0.0
    %1234 = vmatpush1.xpose.msra.mxu0 0.0
    %1235 = vmatprep.subr.mxu0 0.0
    %1236 = vmatpush1.xpose.msra.mxu0 0.0
    %1237 = vmatprep.subr.mxu0 0.0
    %1238 = vmatpush1.xpose.msra.mxu0 0.0
    %1239 = vmatprep.subr.mxu0 0.0
    %1240 = vmatpush1.xpose.msra.mxu0 0.0
    %1241 = vmatprep.subr.mxu0 0.0
    %1242 = vmatpush1.xpose.msra.mxu0 0.0
    %1243 = vmatprep.mubr.f32.mxu0 0.0
    %1244 = vmatmul.mubr.f32.gmra.mrb[0].mxu0 %v1175
    %v1245 = vpop.f32.mrb[0].mxu0
    %v1246 = vadd.f32 0.0, %v1245
    %v1247 = vpop.f32.mrb[0].mxu0
    %1248 = vdwg.mxu0
    %v1249 = vsel %vm160, %v1246, -inf
    %1250 = vmax.xlane.f32.xlu0 %v1249
    %v1251 = vpop.xlane.xlu0 %1250
    %v1252 = vsub.f32 %v1246, %v1251
    %v1253 = vmul.f32 %v1252, 1.442695
    %v1254 = vpow.pop %v1253
    %v1255 = vsel %vm160, %v1254, 0.0
    %1256 = vadd.xlane.f32.xlu0 %v1255
    %v1257 = vpop.xlane.xlu0 %1256
    %v1258 = vrcp.pop %v1257
    %v1259 = vmul.f32 %v1254, %v1258
    %1260 = vrot.lane.b32.xlu0 %v154, 48
    %v1261 = vpop.permute.xlu0 %1260
    %v1264 = vsel %vm160, %v1259, 0
    %1266 = vmatprep.subr.mxu0 0.0
    %1267 = vmatpush1.msra.mxu0 %v1261
    %1268 = vmatprep.subr.mxu0 0.0
    %1269 = vmatpush1.msra.mxu0 0.0
    %1270 = vmatprep.subr.mxu0 0.0
    %1271 = vmatpush1.msra.mxu0 0.0
    %1272 = vmatprep.subr.mxu0 0.0
    %1273 = vmatpush1.msra.mxu0 0.0
    %1274 = vmatprep.subr.mxu0 0.0
    %1275 = vmatpush1.msra.mxu0 0.0
    %1276 = vmatprep.subr.mxu0 0.0
    %1277 = vmatpush1.msra.mxu0 0.0
    %1278 = vmatprep.subr.mxu0 0.0
    %1279 = vmatpush1.msra.mxu0 0.0
    %1280 = vmatprep.subr.mxu0 0.0
    %1281 = vmatpush1.msra.mxu0 0.0
    %1282 = vmatprep.subr.mxu0 0.0
    %1283 = vmatpush1.msra.mxu0 0.0
    %1284 = vmatprep.subr.mxu0 0.0
    %1285 = vmatpush1.msra.mxu0 0.0
    %1286 = vmatprep.subr.mxu0 0.0
    %1287 = vmatpush1.msra.mxu0 0.0
    %1288 = vmatprep.subr.mxu0 0.0
    %1289 = vmatpush1.msra.mxu0 0.0
    %1290 = vmatprep.subr.mxu0 0.0
    %1291 = vmatpush1.msra.mxu0 0.0
    %1292 = vmatprep.subr.mxu0 0.0
    %1293 = vmatpush1.msra.mxu0 0.0
    %1294 = vmatprep.subr.mxu0 0.0
    %1295 = vmatpush1.msra.mxu0 0.0
    %1296 = vmatprep.subr.mxu0 0.0
    %1297 = vmatpush1.msra.mxu0 0.0
    %1298 = vmatprep.subr.mxu0 0.0
    %1299 = vmatpush1.msra.mxu0 0.0
    %1300 = vmatprep.subr.mxu0 0.0
    %1301 = vmatpush1.msra.mxu0 0.0
    %1302 = vmatprep.subr.mxu0 0.0
    %1303 = vmatpush1.msra.mxu0 0.0
    %1304 = vmatprep.subr.mxu0 0.0
    %1305 = vmatpush1.msra.mxu0 0.0
    %1306 = vmatprep.subr.mxu0 0.0
    %1307 = vmatpush1.msra.mxu0 0.0
    %1308 = vmatprep.subr.mxu0 0.0
    %1309 = vmatpush1.msra.mxu0 0.0
    %1310 = vmatprep.subr.mxu0 0.0
    %1311 = vmatpush1.msra.mxu0 0.0
    %1312 = vmatprep.subr.mxu0 0.0
    %1313 = vmatpush1.msra.mxu0 0.0
    %1314 = vmatprep.subr.mxu0 0.0
    %1315 = vmatpush1.msra.mxu0 0.0
    %1316 = vmatprep.subr.mxu0 0.0
    %1317 = vmatpush1.msra.mxu0 0.0
    %1318 = vmatprep.subr.mxu0 0.0
    %1319 = vmatpush1.msra.mxu0 0.0
    %1320 = vmatprep.subr.mxu0 0.0
    %1321 = vmatpush1.msra.mxu0 0.0
    %1322 = vmatprep.subr.mxu0 0.0
    %1323 = vmatpush1.msra.mxu0 0.0
    %1324 = vmatprep.subr.mxu0 0.0
    %1325 = vmatpush1.msra.mxu0 0.0
    %1326 = vmatprep.subr.mxu0 0.0
    %1327 = vmatpush1.msra.mxu0 0.0
    %1328 = vmatprep.subr.mxu0 0.0
    %1329 = vmatpush1.msra.mxu0 0.0
    %1330 = vmatprep.mubr.f32.mxu0 0.0
    %1331 = vmatmul.mubr.f32.gmra.mrb[0].mxu0 %v1264
    %v1332 = vpop.f32.mrb[0].mxu0
    %v1333 = vadd.f32 0.0, %v1332
    %v1334 = vpop.f32.mrb[0].mxu0
    %1335 = vdwg.mxu0
    %1337 = vrot.lane.b32.xlu0 %v1333, 16
    %v1338 = vpop.permute.xlu0 %1337
    %1340 = vst.msk [vmem:[#allocation2 + $0x8] sm:$0xff] %vm663, %v1338
    %1341 = vrot.lane.b32.xlu0 %v154, 104
    %v1342 = vpop.permute.xlu0 %1341
    %1343 = vrot.lane.b32.xlu0 %v154, 72
    %v1344 = vpop.permute.xlu0 %1343
    %v1345 = vsel %vm160, %v1342, 0
    %v1347 = vsel %vm160, %v1344, 0
    %1349 = vmatprep.subr.mxu0 0.0
    %1350 = vmatpush1.xpose.msra.mxu0 %v1347
    %1351 = vmatprep.subr.mxu0 0.0
    %1352 = vmatpush1.xpose.msra.mxu0 0.0
    %1353 = vmatprep.subr.mxu0 0.0
    %1354 = vmatpush1.xpose.msra.mxu0 0.0
    %1355 = vmatprep.subr.mxu0 0.0
    %1356 = vmatpush1.xpose.msra.mxu0 0.0
    %1357 = vmatprep.subr.mxu0 0.0
    %1358 = vmatpush1.xpose.msra.mxu0 0.0
    %1359 = vmatprep.subr.mxu0 0.0
    %1360 = vmatpush1.xpose.msra.mxu0 0.0
    %1361 = vmatprep.subr.mxu0 0.0
    %1362 = vmatpush1.xpose.msra.mxu0 0.0
    %1363 = vmatprep.subr.mxu0 0.0
    %1364 = vmatpush1.xpose.msra.mxu0 0.0
    %1365 = vmatprep.subr.mxu0 0.0
    %1366 = vmatpush1.xpose.msra.mxu0 0.0
    %1367 = vmatprep.subr.mxu0 0.0
    %1368 = vmatpush1.xpose.msra.mxu0 0.0
    %1369 = vmatprep.subr.mxu0 0.0
    %1370 = vmatpush1.xpose.msra.mxu0 0.0
    %1371 = vmatprep.subr.mxu0 0.0
    %1372 = vmatpush1.xpose.msra.mxu0 0.0
    %1373 = vmatprep.subr.mxu0 0.0
    %1374 = vmatpush1.xpose.msra.mxu0 0.0
    %1375 = vmatprep.subr.mxu0 0.0
    %1376 = vmatpush1.xpose.msra.mxu0 0.0
    %1377 = vmatprep.subr.mxu0 0.0
    %1378 = vmatpush1.xpose.msra.mxu0 0.0
    %1379 = vmatprep.subr.mxu0 0.0
    %1380 = vmatpush1.xpose.msra.mxu0 0.0
    %1381 = vmatprep.subr.mxu0 0.0
    %1382 = vmatpush1.xpose.msra.mxu0 0.0
    %1383 = vmatprep.subr.mxu0 0.0
    %1384 = vmatpush1.xpose.msra.mxu0 0.0
    %1385 = vmatprep.subr.mxu0 0.0
    %1386 = vmatpush1.xpose.msra.mxu0 0.0
    %1387 = vmatprep.subr.mxu0 0.0
    %1388 = vmatpush1.xpose.msra.mxu0 0.0
    %1389 = vmatprep.subr.mxu0 0.0
    %1390 = vmatpush1.xpose.msra.mxu0 0.0
    %1391 = vmatprep.subr.mxu0 0.0
    %1392 = vmatpush1.xpose.msra.mxu0 0.0
    %1393 = vmatprep.subr.mxu0 0.0
    %1394 = vmatpush1.xpose.msra.mxu0 0.0
    %1395 = vmatprep.subr.mxu0 0.0
    %1396 = vmatpush1.xpose.msra.mxu0 0.0
    %1397 = vmatprep.subr.mxu0 0.0
    %1398 = vmatpush1.xpose.msra.mxu0 0.0
    %1399 = vmatprep.subr.mxu0 0.0
    %1400 = vmatpush1.xpose.msra.mxu0 0.0
    %1401 = vmatprep.subr.mxu0 0.0
    %1402 = vmatpush1.xpose.msra.mxu0 0.0
    %1403 = vmatprep.subr.mxu0 0.0
    %1404 = vmatpush1.xpose.msra.mxu0 0.0
    %1405 = vmatprep.subr.mxu0 0.0
    %1406 = vmatpush1.xpose.msra.mxu0 0.0
    %1407 = vmatprep.subr.mxu0 0.0
    %1408 = vmatpush1.xpose.msra.mxu0 0.0
    %1409 = vmatprep.subr.mxu0 0.0
    %1410 = vmatpush1.xpose.msra.mxu0 0.0
    %1411 = vmatprep.subr.mxu0 0.0
    %1412 = vmatpush1.xpose.msra.mxu0 0.0
    %1413 = vmatprep.mubr.f32.mxu0 0.0
    %1414 = vmatmul.mubr.f32.gmra.mrb[0].mxu0 %v1345
    %v1415 = vpop.f32.mrb[0].mxu0
    %v1416 = vadd.f32 0.0, %v1415
    %v1417 = vpop.f32.mrb[0].mxu0
    %1418 = vdwg.mxu0
    %v1419 = vsel %vm160, %v1416, -inf
    %1420 = vmax.xlane.f32.xlu0 %v1419
    %v1421 = vpop.xlane.xlu0 %1420
    %v1422 = vsub.f32 %v1416, %v1421
    %v1423 = vmul.f32 %v1422, 1.442695
    %v1424 = vpow.pop %v1423
    %v1425 = vsel %vm160, %v1424, 0.0
    %1426 = vadd.xlane.f32.xlu0 %v1425
    %v1427 = vpop.xlane.xlu0 %1426
    %v1428 = vrcp.pop %v1427
    %v1429 = vmul.f32 %v1424, %v1428
    %1430 = vrot.lane.b32.xlu0 %v154, 40
    %v1431 = vpop.permute.xlu0 %1430
    %v1434 = vsel %vm160, %v1429, 0
    %1436 = vmatprep.subr.mxu0 0.0
    %1437 = vmatpush1.msra.mxu0 %v1431
    %1438 = vmatprep.subr.mxu0 0.0
    %1439 = vmatpush1.msra.mxu0 0.0
    %1440 = vmatprep.subr.mxu0 0.0
    %1441 = vmatpush1.msra.mxu0 0.0
    %1442 = vmatprep.subr.mxu0 0.0
    %1443 = vmatpush1.msra.mxu0 0.0
    %1444 = vmatprep.subr.mxu0 0.0
    %1445 = vmatpush1.msra.mxu0 0.0
    %1446 = vmatprep.subr.mxu0 0.0
    %1447 = vmatpush1.msra.mxu0 0.0
    %1448 = vmatprep.subr.mxu0 0.0
    %1449 = vmatpush1.msra.mxu0 0.0
    %1450 = vmatprep.subr.mxu0 0.0
    %1451 = vmatpush1.msra.mxu0 0.0
    %1452 = vmatprep.subr.mxu0 0.0
    %1453 = vmatpush1.msra.mxu0 0.0
    %1454 = vmatprep.subr.mxu0 0.0
    %1455 = vmatpush1.msra.mxu0 0.0
    %1456 = vmatprep.subr.mxu0 0.0
    %1457 = vmatpush1.msra.mxu0 0.0
    %1458 = vmatprep.subr.mxu0 0.0
    %1459 = vmatpush1.msra.mxu0 0.0
    %1460 = vmatprep.subr.mxu0 0.0
    %1461 = vmatpush1.msra.mxu0 0.0
    %1462 = vmatprep.subr.mxu0 0.0
    %1463 = vmatpush1.msra.mxu0 0.0
    %1464 = vmatprep.subr.mxu0 0.0
    %1465 = vmatpush1.msra.mxu0 0.0
    %1466 = vmatprep.subr.mxu0 0.0
    %1467 = vmatpush1.msra.mxu0 0.0
    %1468 = vmatprep.subr.mxu0 0.0
    %1469 = vmatpush1.msra.mxu0 0.0
    %1470 = vmatprep.subr.mxu0 0.0
    %1471 = vmatpush1.msra.mxu0 0.0
    %1472 = vmatprep.subr.mxu0 0.0
    %1473 = vmatpush1.msra.mxu0 0.0
    %1474 = vmatprep.subr.mxu0 0.0
    %1475 = vmatpush1.msra.mxu0 0.0
    %1476 = vmatprep.subr.mxu0 0.0
    %1477 = vmatpush1.msra.mxu0 0.0
    %1478 = vmatprep.subr.mxu0 0.0
    %1479 = vmatpush1.msra.mxu0 0.0
    %1480 = vmatprep.subr.mxu0 0.0
    %1481 = vmatpush1.msra.mxu0 0.0
    %1482 = vmatprep.subr.mxu0 0.0
    %1483 = vmatpush1.msra.mxu0 0.0
    %1484 = vmatprep.subr.mxu0 0.0
    %1485 = vmatpush1.msra.mxu0 0.0
    %1486 = vmatprep.subr.mxu0 0.0
    %1487 = vmatpush1.msra.mxu0 0.0
    %1488 = vmatprep.subr.mxu0 0.0
    %1489 = vmatpush1.msra.mxu0 0.0
    %1490 = vmatprep.subr.mxu0 0.0
    %1491 = vmatpush1.msra.mxu0 0.0
    %1492 = vmatprep.subr.mxu0 0.0
    %1493 = vmatpush1.msra.mxu0 0.0
    %1494 = vmatprep.subr.mxu0 0.0
    %1495 = vmatpush1.msra.mxu0 0.0
    %1496 = vmatprep.subr.mxu0 0.0
    %1497 = vmatpush1.msra.mxu0 0.0
    %1498 = vmatprep.subr.mxu0 0.0
    %1499 = vmatpush1.msra.mxu0 0.0
    %1500 = vmatprep.mubr.f32.mxu0 0.0
    %1501 = vmatmul.mubr.f32.gmra.mrb[0].mxu0 %v1434
    %v1502 = vpop.f32.mrb[0].mxu0
    %v1503 = vadd.f32 0.0, %v1502
    %v1504 = vpop.f32.mrb[0].mxu0
    %1505 = vdwg.mxu0
    %1507 = vrot.lane.b32.xlu0 %v1503, 24
    %v1508 = vpop.permute.xlu0 %1507
    %1510 = vst.msk [vmem:[#allocation2 + $0x8] sm:$0xff] %vm834, %v1508
    %v1511 = vld [vmem:[#allocation2] sm:$0xff]
    %v1512 = vld [vmem:[#allocation2 + $0x8] sm:$0xff]
    %v1513 = vld [vmem:[#allocation8] sm:$0xff]
    %v1514 = vld [vmem:[#allocation8 + $0x8] sm:$0xff]
    %v1515 = vld [vmem:[#allocation8 + $0x10] sm:$0xff]
    %v1516 = vld [vmem:[#allocation8 + $0x18] sm:$0xff]
    %v1517 = vld [vmem:[%s4] sm:$0x1]
    %v1519 = vlaneseq
    %v1520 = vshrl.u32 %v1519, 7
    %v1521 = vsub.s32 0, %v1520
    %v1522 = vrot.slane %v1517, %v1521
    %v1525 = vsel %vm75, %v1511, 0
    %v1528 = vsel %vm75, %v1512, 0
    %1530 = vmatprep.subr.mxu0 0.0
    %1531 = vmatpush1.msra.mxu0 %v1513
    %1532 = vmatprep.subr.mxu0 0.0
    %1533 = vmatpush1.msra.mxu0 %v1514
    %1534 = vmatprep.subr.mxu0 0.0
    %1535 = vmatpush1.msra.mxu0 %v1515
    %1536 = vmatprep.subr.mxu0 0.0
    %1537 = vmatpush1.msra.mxu0 %v1516
    %1538 = vmatprep.subr.mxu0 0.0
    %1539 = vmatpush1.msra.mxu0 0.0
    %1540 = vmatprep.subr.mxu0 0.0
    %1541 = vmatpush1.msra.mxu0 0.0
    %1542 = vmatprep.subr.mxu0 0.0
    %1543 = vmatpush1.msra.mxu0 0.0
    %1544 = vmatprep.subr.mxu0 0.0
    %1545 = vmatpush1.msra.mxu0 0.0
    %1546 = vmatprep.subr.mxu0 0.0
    %1547 = vmatpush1.msra.mxu0 0.0
    %1548 = vmatprep.subr.mxu0 0.0
    %1549 = vmatpush1.msra.mxu0 0.0
    %1550 = vmatprep.subr.mxu0 0.0
    %1551 = vmatpush1.msra.mxu0 0.0
    %1552 = vmatprep.subr.mxu0 0.0
    %1553 = vmatpush1.msra.mxu0 0.0
    %1554 = vmatprep.subr.mxu0 0.0
    %1555 = vmatpush1.msra.mxu0 0.0
    %1556 = vmatprep.subr.mxu0 0.0
    %1557 = vmatpush1.msra.mxu0 0.0
    %1558 = vmatprep.subr.mxu0 0.0
    %1559 = vmatpush1.msra.mxu0 0.0
    %1560 = vmatprep.subr.mxu0 0.0
    %1561 = vmatpush1.msra.mxu0 0.0
    %1562 = vmatprep.subr.mxu0 0.0
    %1563 = vmatpush1.msra.mxu0 0.0
    %1564 = vmatprep.subr.mxu0 0.0
    %1565 = vmatpush1.msra.mxu0 0.0
    %1566 = vmatprep.subr.mxu0 0.0
    %1567 = vmatpush1.msra.mxu0 0.0
    %1568 = vmatprep.subr.mxu0 0.0
    %1569 = vmatpush1.msra.mxu0 0.0
    %1570 = vmatprep.subr.mxu0 0.0
    %1571 = vmatpush1.msra.mxu0 0.0
    %1572 = vmatprep.subr.mxu0 0.0
    %1573 = vmatpush1.msra.mxu0 0.0
    %1574 = vmatprep.subr.mxu0 0.0
    %1575 = vmatpush1.msra.mxu0 0.0
    %1576 = vmatprep.subr.mxu0 0.0
    %1577 = vmatpush1.msra.mxu0 0.0
    %1578 = vmatprep.subr.mxu0 0.0
    %1579 = vmatpush1.msra.mxu0 0.0
    %1580 = vmatprep.subr.mxu0 0.0
    %1581 = vmatpush1.msra.mxu0 0.0
    %1582 = vmatprep.subr.mxu0 0.0
    %1583 = vmatpush1.msra.mxu0 0.0
    %1584 = vmatprep.subr.mxu0 0.0
    %1585 = vmatpush1.msra.mxu0 0.0
    %1586 = vmatprep.subr.mxu0 0.0
    %1587 = vmatpush1.msra.mxu0 0.0
    %1588 = vmatprep.subr.mxu0 0.0
    %1589 = vmatpush1.msra.mxu0 0.0
    %1590 = vmatprep.subr.mxu0 0.0
    %1591 = vmatpush1.msra.mxu0 0.0
    %1592 = vmatprep.subr.mxu0 0.0
    %1593 = vmatpush1.msra.mxu0 0.0
    %1594 = vmatprep.mubr.f32.mxu0 0.0
    %1595 = vmatmul.mubr.f32.gmra.mrb[0].mxu0 %v1525
    %v1596 = vpop.f32.mrb[0].mxu0
    %v1597 = vadd.f32 %v1522, %v1596
    %v1598 = vpop.f32.mrb[0].mxu0
    %1599 = vmatprep.mubr.f32.mxu0 0.0
    %1600 = vmatmul.mubr.f32.gmra.mrb[0].mxu0 %v1528
    %v1601 = vpop.f32.mrb[0].mxu0
    %v1602 = vadd.f32 %v1522, %v1601
    %v1603 = vpop.f32.mrb[0].mxu0
    %1604 = vdwg.mxu0
    %1605 = vst.msk [vmem:[#allocation9] sm:$0xff] %vm75, %v1597
    %1606 = vst.msk [vmem:[#allocation9 + $0x8] sm:$0xff] %vm75, %v1602
    // Predicated region
    $region34: #{tpu_custom_call.1} parent=1 // pred_check
      _
    $region35: #{tpu_custom_call.1} parent=1 // pred_check_branch
      %1608 = sbr.rel (0) target = $region37
    $region36: #{tpu_custom_call.1} parent=1 // pred_region
      %s1610 = ssub.s32 256, 256
      %1611 = vsyncadd [#allocation5], %s1610
      %s1612 = sshll.u32 [#allocation9], 4
      %s1613 = int_to_ptr.vmem [resolvable:$true] %s1612
      %1618 = dma.vmem_to_hbm [thread:$0]  %s1613, 256, %s5, [#allocation5], 128, 128, 8
    $region37: #{tpu_custom_call.1} parent=1 // pred_fallthru
      _
    // Predicated region
    $region38: #{tpu_custom_call.1} parent=1 // pred_check
      _
    $region39: #{tpu_custom_call.1} parent=1 // pred_check_branch
      %1620 = sbr.rel (0) target = $region41
    $region40: #{tpu_custom_call.1} parent=1 // pred_region
      %1621 = dma.done [#allocation5], 256
    $region41: #{tpu_custom_call.1} parent=1 // pred_fallthru
      _
    %1622 = vsyncpa [#allocation4], 1
    %1623 = vsyncpa [#allocation7], 1
    %1624 = vsyncpa [#allocation5], 1

</llo_original>
